<compile_context>
chip_gen: v7x
topology: tpu7x:2x2x1
jax: 0.10.0
libtpu: 0.0.40
codegen_flags: <defaults>
</compile_context>

<pallas_src>
import functools
import math

import jax
import jax.numpy as jnp
from jax.experimental import pallas as pl
from jax.experimental.pallas import tpu as pltpu


# ----------------------------------------------------------------------------
# Generation-aware VMEM budget / tiling defaults
# ----------------------------------------------------------------------------
def _tpu_vmem_bytes():
    try:
        return int(pltpu.get_tpu_info().vmem_capacity_bytes)
    except Exception:
        return 128 * 1024 * 1024  # assume v5e/v6e-class part if query fails


_VMEM_CAP = _tpu_vmem_bytes()
# Leave headroom for double-buffered row tiles: ~100 MiB on 128 MiB parts
# (v5e/v6e), tighter (<48 MiB) on v7x's 64 MiB VMEM.
_VMEM_LIMIT = min(int(_VMEM_CAP * 0.75), 100 * 1024 * 1024)
_DEFAULT_BLOCK_M = 512 if _VMEM_CAP >= 100 * 1024 * 1024 else 256


def _round_up(x, m):
    return (x + m - 1) // m * m


def _row_tiling(n, block_m):
    """(padded_rows, row_tile): padded_rows % row_tile == 0, row_tile % 8 == 0."""
    n8 = _round_up(n, 8)
    if n8 <= block_m:
        return n8, n8
    n_pad = _round_up(n, block_m)
    return n_pad, block_m


def _pad_rows(x, n_pad):
    n = x.shape[0]
    return x if n == n_pad else jnp.pad(x, ((0, n_pad - n), (0, 0)))


def _gelu(y):
    # TODO(synk): PyTorch nn.GELU default is exact erf-GELU; tanh approx used here.
    c = math.sqrt(2.0 / math.pi)
    return 0.5 * y * (1.0 + jnp.tanh(c * (y + 0.044715 * y * y * y)))


# ----------------------------------------------------------------------------
# Dense kernels: row-tiled, resident (K, M) bf16 weight, f32 accumulation,
# bf16 outputs.  Variants: plain (+gelu), fused residual+LayerNorm epilogue,
# and fused-QKV with split Q/K/V outputs.
# ----------------------------------------------------------------------------
def _dense_kernel(x_ref, w_ref, b_ref, o_ref, *, activation):
    y = jnp.dot(x_ref[...], w_ref[...], preferred_element_type=jnp.float32)
    y = y + b_ref[...]
    if activation == "gelu":
        y = _gelu(y)
    o_ref[...] = y.astype(o_ref.dtype)


def _dense_ln_kernel(x_ref, w_ref, b_ref, r_ref, g_ref, beta_ref, o_ref, *, eps):
    # dense + residual add + LayerNorm fused epilogue (output width == hidden,
    # so each row tile holds the full row needed for the mean/var reductions).
    y = jnp.dot(x_ref[...], w_ref[...], preferred_element_type=jnp.float32)
    y = y + b_ref[...] + r_ref[...].astype(jnp.float32)
    mu = jnp.mean(y, axis=-1, keepdims=True)
    yc = y - mu
    var = jnp.mean(yc * yc, axis=-1, keepdims=True)
    o_ref[...] = (yc * jax.lax.rsqrt(var + eps) * g_ref[...]
                  + beta_ref[...]).astype(o_ref.dtype)


def _dense_qkv_kernel(x_ref, w_ref, b_ref, q_ref, k_ref, v_ref):
    # Fused QKV projection; the (tm, 3H) product is split into three separate
    # slabs so attention can be fed lane-aligned per-head(-group) blocks by DMA.
    y = jnp.dot(x_ref[...], w_ref[...], preferred_element_type=jnp.float32)
    y = y + b_ref[...]
    h = q_ref.shape[-1]
    q_ref[...] = y[:, :h].astype(q_ref.dtype)
    k_ref[...] = y[:, h:2 * h].astype(k_ref.dtype)
    v_ref[...] = y[:, 2 * h:].astype(v_ref.dtype)


def _dense_common(n, k, block_m):
    block_m = block_m or _DEFAULT_BLOCK_M
    n_pad, tm = _row_tiling(n, block_m)
    cp = pltpu.CompilerParams(dimension_semantics=("parallel",),
                              vmem_limit_bytes=_VMEM_LIMIT)
    return n_pad, tm, cp


def dense(x, w, b, *, activation=None, block_m=None):
    """y = x @ w + b (+ activation); emits bf16. Weight resident in VMEM."""
    n, k = x.shape
    m = w.shape[1]
    n_pad, tm, cp = _dense_common(n, k, block_m)
    xp = _pad_rows(x.astype(jnp.bfloat16), n_pad)
    out = pl.pallas_call(
        functools.partial(_dense_kernel, activation=activation),
        out_shape=jax.ShapeDtypeStruct((n_pad, m), jnp.bfloat16),
        grid=(n_pad // tm,),
        in_specs=[
            pl.BlockSpec((tm, k), lambda i: (i, 0)),
            pl.BlockSpec((k, m), lambda i: (0, 0)),   # resident weight
            pl.BlockSpec((1, m), lambda i: (0, 0)),
        ],
        out_specs=pl.BlockSpec((tm, m), lambda i: (i, 0)),
        compiler_params=cp,
    )(xp, w.astype(jnp.bfloat16), b.reshape(1, m).astype(jnp.float32))
    return out[:n] if n_pad != n else out


def dense_ln_residual(x, w, b, residual, gamma, beta, *, eps=1e-12, block_m=None):
    """(x @ w + b + residual) -> LayerNorm, fused; emits bf16."""
    n, k = x.shape
    m = w.shape[1]
    n_pad, tm, cp = _dense_common(n, k, block_m)
    xp = _pad_rows(x.astype(jnp.bfloat16), n_pad)
    rp = _pad_rows(residual.astype(jnp.bfloat16), n_pad)
    out = pl.pallas_call(
        functools.partial(_dense_ln_kernel, eps=eps),
        out_shape=jax.ShapeDtypeStruct((n_pad, m), jnp.bfloat16),
        grid=(n_pad // tm,),
        in_specs=[
            pl.BlockSpec((tm, k), lambda i: (i, 0)),
            pl.BlockSpec((k, m), lambda i: (0, 0)),   # resident weight
            pl.BlockSpec((1, m), lambda i: (0, 0)),
            pl.BlockSpec((tm, m), lambda i: (i, 0)),  # residual row tile
            pl.BlockSpec((1, m), lambda i: (0, 0)),
            pl.BlockSpec((1, m), lambda i: (0, 0)),
        ],
        out_specs=pl.BlockSpec((tm, m), lambda i: (i, 0)),
        compiler_params=cp,
    )(xp, w.astype(jnp.bfloat16), b.reshape(1, m).astype(jnp.float32),
      rp, gamma.reshape(1, m).astype(jnp.float32),
      beta.reshape(1, m).astype(jnp.float32))
    return out[:n] if n_pad != n else out


def dense_qkv(x, w, b, *, block_m=None):
    """Fused QKV projection; returns (q, k, v) bf16 slabs of shape (n, H)."""
    n, k = x.shape
    m3 = w.shape[1]
    h = m3 // 3
    n_pad, tm, cp = _dense_common(n, k, block_m)
    xp = _pad_rows(x.astype(jnp.bfloat16), n_pad)
    q, kk, v = pl.pallas_call(
        _dense_qkv_kernel,
        out_shape=tuple(jax.ShapeDtypeStruct((n_pad, h), jnp.bfloat16)
                        for _ in range(3)),
        grid=(n_pad // tm,),
        in_specs=[
            pl.BlockSpec((tm, k), lambda i: (i, 0)),
            pl.BlockSpec((k, m3), lambda i: (0, 0)),  # resident weight
            pl.BlockSpec((1, m3), lambda i: (0, 0)),
        ],
        out_specs=tuple(pl.BlockSpec((tm, h), lambda i: (i, 0))
                        for _ in range(3)),
        compiler_params=cp,
    )(xp, w.astype(jnp.bfloat16), b.reshape(1, m3).astype(jnp.float32))
    if n_pad != n:
        q, kk, v = q[:n], kk[:n], v[:n]
    return q, kk, v


# ----------------------------------------------------------------------------
# Standalone LayerNorm (embeddings only; the per-layer LNs are fused above).
# ----------------------------------------------------------------------------
def _ln_kernel(x_ref, g_ref, b_ref, o_ref, *, eps):
    x = x_ref[...].astype(jnp.float32)
    mu = jnp.mean(x, axis=-1, keepdims=True)
    xc = x - mu
    var = jnp.mean(xc * xc, axis=-1, keepdims=True)
    o_ref[...] = (xc * jax.lax.rsqrt(var + eps) * g_ref[...]
                  + b_ref[...]).astype(o_ref.dtype)


def layernorm(x, gamma, beta, *, eps=1e-12, block_m=None):
    n, h = x.shape
    n_pad, tm, cp = _dense_common(n, h, block_m)
    xp = _pad_rows(x, n_pad)
    out = pl.pallas_call(
        functools.partial(_ln_kernel, eps=eps),
        out_shape=jax.ShapeDtypeStruct((n_pad, h), jnp.bfloat16),
        grid=(n_pad // tm,),
        in_specs=[
            pl.BlockSpec((tm, h), lambda i: (i, 0)),
            pl.BlockSpec((1, h), lambda i: (0, 0)),
            pl.BlockSpec((1, h), lambda i: (0, 0)),
        ],
        out_specs=pl.BlockSpec((tm, h), lambda i: (i, 0)),
        compiler_params=cp,
    )(xp, gamma.reshape(1, h).astype(jnp.float32),
      beta.reshape(1, h).astype(jnp.float32))
    return out[:n] if n_pad != n else out


# ----------------------------------------------------------------------------
# Multi-head self-attention: grid = (batch, head-group).  The DMA delivers
# lane-aligned (S, head_group_width) Q/K/V blocks; each group unrolls at most
# a couple of heads and does one lane-dense store into its output slice.
# ----------------------------------------------------------------------------
def _attn_kernel(q_ref, k_ref, v_ref, m_ref, o_ref, *, heads_per_group, dh, scale):
    mask = m_ref[...]                       # (1, S) additive mask, f32
    ctxs = []
    for h in range(heads_per_group):        # small static unroll (1-2 heads typ.)
        q = q_ref[:, h * dh:(h + 1) * dh]
        k = k_ref[:, h * dh:(h + 1) * dh]
        v = v_ref[:, h * dh:(h + 1) * dh]
        s = jax.lax.dot_general(q, k, (((1,), (1,)), ((), ())),
                                preferred_element_type=jnp.float32) * scale
        s = s + mask
        s = s - jnp.max(s, axis=-1, keepdims=True)
        # TODO(synk): on v6e/v7x the exp could run in bf16 (~2x EUP rate); kept
        # f32 here for v5e portability / accuracy.
        p = jnp.exp(s)
        p = p * pl.reciprocal(jnp.sum(p, axis=-1, keepdims=True), approx=True)
        ctxs.append(jnp.dot(p.astype(jnp.bfloat16), v,
                            preferred_element_type=jnp.float32))
    grp = ctxs[0] if heads_per_group == 1 else jnp.concatenate(ctxs, axis=-1)
    o_ref[...] = grp.astype(o_ref.dtype)    # single lane-dense store per group


def mha_attention(q, k, v, mask_add, *, n_heads, seq_len):
    """q/k/v: (B*S, H) bf16; mask_add: (B, 1, S) additive f32 mask."""
    n_tok, H = q.shape
    dh = H // n_heads
    B = n_tok // seq_len
    scale = 1.0 / math.sqrt(dh)
    # Head-group width: a lane-aligned 128 columns (head pairs for dh=64)
    # when H allows it, otherwise all heads in one group (small-H fallback).
    if H % 128 == 0 and dh <= 128 and 128 % dh == 0:
        hg_w = 128
    else:
        hg_w = H
    heads_per_group = hg_w // dh
    n_groups = H // hg_w
    out = pl.pallas_call(
        functools.partial(_attn_kernel, heads_per_group=heads_per_group,
                          dh=dh, scale=scale),
        out_shape=jax.ShapeDtypeStruct((n_tok, H), jnp.bfloat16),
        grid=(B, n_groups),
        in_specs=[
            pl.BlockSpec((seq_len, hg_w), lambda b, g: (b, g)),
            pl.BlockSpec((seq_len, hg_w), lambda b, g: (b, g)),
            pl.BlockSpec((seq_len, hg_w), lambda b, g: (b, g)),
            pl.BlockSpec((None, 1, seq_len), lambda b, g: (b, 0, 0)),
        ],
        out_specs=pl.BlockSpec((seq_len, hg_w), lambda b, g: (b, g)),
        compiler_params=pltpu.CompilerParams(
            dimension_semantics=("parallel", "parallel"),
            vmem_limit_bytes=_VMEM_LIMIT,
        ),
    )(q, k, v, mask_add)
    # TODO(synk): for S >= 512 (especially v7x's 64 MiB VMEM) switch to a
    # KV-tiled online-softmax (flash) variant to bound the (S, S) score tensor.
    return out


# ----------------------------------------------------------------------------
# Synthetic BERT parameters (deterministic init; no checkpoint load).
# Matmul weights stored bf16 (MXU-native), norms/biases f32.
# ----------------------------------------------------------------------------
def init_params(key, *, vocab, max_pos, H, H_ff, n_layers):
    def normal(k, shape, std=0.02, dtype=jnp.float32):
        return (std * jax.random.normal(k, shape, dtype=jnp.float32)).astype(dtype)

    keys = iter(jax.random.split(key, 8 + 8 * n_layers))
    params = {
        "word_emb": normal(next(keys), (vocab, H)),
        "pos_emb": normal(next(keys), (max_pos, H)),
        "type_emb": normal(next(keys), (2, H)),
        "emb_ln_g": jnp.ones((H,), jnp.float32),
        "emb_ln_b": jnp.zeros((H,), jnp.float32),
        "layers": [],
        "head_w": normal(next(keys), (H, 1)),
        "head_b": jnp.zeros((1,), jnp.float32),
    }
    for _ in range(n_layers):
        lp = {
            "qkv_w": normal(next(keys), (H, 3 * H), dtype=jnp.bfloat16),
            "qkv_b": jnp.zeros((3 * H,), jnp.float32),
            "o_w": normal(next(keys), (H, H), dtype=jnp.bfloat16),
            "o_b": jnp.zeros((H,), jnp.float32),
            "attn_ln_g": jnp.ones((H,), jnp.float32),
            "attn_ln_b": jnp.zeros((H,), jnp.float32),
            "ff1_w": normal(next(keys), (H, H_ff), dtype=jnp.bfloat16),
            "ff1_b": jnp.zeros((H_ff,), jnp.float32),
            "ff2_w": normal(next(keys), (H_ff, H), dtype=jnp.bfloat16),
            "ff2_b": jnp.zeros((H,), jnp.float32),
            "ff_ln_g": jnp.ones((H,), jnp.float32),
            "ff_ln_b": jnp.zeros((H,), jnp.float32),
        }
        params["layers"].append(lp)
    return params


# ----------------------------------------------------------------------------
# Forward pass  (== BERTModelForClassification.forward, eval mode)
# ----------------------------------------------------------------------------
def bert_classifier_forward(params, input_ids, attention_mask, *, n_heads):
    B, S = input_ids.shape
    H = params["word_emb"].shape[1]

    # Embedding gathers are glue (plain JAX); normalization is a Pallas kernel.
    emb = (params["word_emb"][input_ids]
           + params["pos_emb"][:S][None, :, :]
           + params["type_emb"][0][None, None, :])
    x = layernorm(emb.reshape(B * S, H), params["emb_ln_g"], params["emb_ln_b"])

    # HuggingFace-style extended additive attention mask
    mask_add = ((1.0 - attention_mask.astype(jnp.float32)) * -10000.0
                ).reshape(B, 1, S)

    for lp in params["layers"]:
        # --- self attention ---
        q, k, v = dense_qkv(x, lp["qkv_w"], lp["qkv_b"])          # 3 x (B*S, H)
        ctx = mha_attention(q, k, v, mask_add, n_heads=n_heads, seq_len=S)
        x = dense_ln_residual(ctx, lp["o_w"], lp["o_b"], x,
                              lp["attn_ln_g"], lp["attn_ln_b"])
        # --- feed forward ---
        ff = dense(x, lp["ff1_w"], lp["ff1_b"], activation="gelu")
        x = dense_ln_residual(ff, lp["ff2_w"], lp["ff2_b"], x,
                              lp["ff_ln_g"], lp["ff_ln_b"])

    hidden_states = x.reshape(B, S, H)
    cls_embeddings = hidden_states[:, 0, :].astype(jnp.float32)    # (B, H)
    # Classifier head (H -> 1) + sigmoid: negligible FLOPs -> plain JAX.
    logits = cls_embeddings @ params["head_w"].astype(jnp.float32) + params["head_b"]
    return jax.nn.sigmoid(logits)                                  # (B, 1)


# ----------------------------------------------------------------------------
if __name__ == "__main__":
    B, S = 2, 8
    H, n_heads, H_ff, n_layers = 32, 2, 64, 2
    vocab, max_pos = 50, 16

    key = jax.random.PRNGKey(0)
    pkey, ikey = jax.random.split(key)
    params = init_params(pkey, vocab=vocab, max_pos=max_pos, H=H,
                         H_ff=H_ff, n_layers=n_layers)

    input_ids = jax.random.randint(ikey, (B, S), 0, vocab, dtype=jnp.int32)
    attention_mask = jnp.array([[1] * S,
                                [1] * (S - 3) + [0] * 3], dtype=jnp.int32)

    fwd = jax.jit(functools.partial(bert_classifier_forward, n_heads=n_heads))
    out = fwd(params, input_ids, attention_mask)
    out = jax.block_until_ready(out)
    assert out.shape == (B, 1)
    assert bool(jnp.all(jnp.isfinite(out)))
    assert bool(jnp.all((out >= 0.0) & (out <= 1.0)))
    print("KERNEL_OK")
</pallas_src>

<mosaic_0001>
module attributes {stable_mosaic.version = 11 : i64} {
  func.func @_attn_kernel(%arg0: i32, %arg1: i32, %arg2: memref<8x32xbf16, #tpu.memory_space<vmem>>, %arg3: memref<8x32xbf16, #tpu.memory_space<vmem>>, %arg4: memref<8x32xbf16, #tpu.memory_space<vmem>>, %arg5: memref<1x1x8xf32, #tpu.memory_space<vmem>>, %arg6: memref<8x32xbf16, #tpu.memory_space<vmem>>) attributes {dimension_semantics = [#tpu.dimension_semantics<parallel>, #tpu.dimension_semantics<parallel>], iteration_bounds = array<i64: 2, 1>, scalar_prefetch = 0 : i64, scratch_operands = 0 : i64, tpu.core_type = #tpu.core_type<tc>, window_params = [{transform_indices = @transform_0, window_bounds = array<i64: 8, 32>}, {transform_indices = @transform_1, window_bounds = array<i64: 8, 32>}, {transform_indices = @transform_2, window_bounds = array<i64: 8, 32>}, {transform_indices = @transform_3, window_bounds = array<i64: 1, 1, 8>}, {transform_indices = @transform_4, window_bounds = array<i64: 8, 32>}]} {
    %c0 = arith.constant 0 : index
    %c0_0 = arith.constant 0 : index
    %c0_1 = arith.constant 0 : index
    %0 = vector.load %arg5[%c0, %c0_0, %c0_1] : memref<1x1x8xf32, #tpu.memory_space<vmem>>, vector<1x1x8xf32>
    %1 = vector.shape_cast %0 : vector<1x1x8xf32> to vector<1x8xf32>
    %c0_2 = arith.constant 0 : index
    %c0_3 = arith.constant 0 : index
    %2 = vector.load %arg2[%c0_2, %c0_3] : memref<8x32xbf16, #tpu.memory_space<vmem>>, vector<8x16xbf16>
    %c0_4 = arith.constant 0 : index
    %c0_5 = arith.constant 0 : index
    %3 = vector.load %arg3[%c0_4, %c0_5] : memref<8x32xbf16, #tpu.memory_space<vmem>>, vector<8x16xbf16>
    %c0_6 = arith.constant 0 : index
    %c0_7 = arith.constant 0 : index
    %4 = vector.load %arg4[%c0_6, %c0_7] : memref<8x32xbf16, #tpu.memory_space<vmem>>, vector<8x16xbf16>
    %cst = arith.constant dense<0.000000e+00> : vector<8x8xf32>
    %5 = tpu.matmul %2, %3, %cst {dimension_numbers = #tpu.dot_dimension_numbers<[1], [1], [0], [0], [0, 0, 1, 0], [], []>} : vector<8x16xbf16>, vector<8x16xbf16>, vector<8x8xf32> -> vector<8x8xf32>
    %cst_8 = arith.constant 2.500000e-01 : f32
    %6 = vector.broadcast %cst_8 : f32 to vector<8x8xf32>
    %7 = arith.mulf %5, %6 : vector<8x8xf32>
    %8 = vector.broadcast %1 : vector<1x8xf32> to vector<8x8xf32>
    %9 = arith.addf %7, %8 : vector<8x8xf32>
    %cst_9 = arith.constant dense<0xFF800000> : vector<8xf32>
    %10 = vector.multi_reduction <maximumf>, %9, %cst_9 [1] : vector<8x8xf32> to vector<8xf32>
    %11 = vector.shape_cast %10 : vector<8xf32> to vector<8x1xf32>
    %12 = vector.broadcast %11 : vector<8x1xf32> to vector<8x8xf32>
    %13 = arith.subf %9, %12 : vector<8x8xf32>
    %14 = math.exp %13 : vector<8x8xf32>
    %cst_10 = arith.constant dense<0.000000e+00> : vector<8xf32>
    %15 = vector.multi_reduction <add>, %14, %cst_10 [1] : vector<8x8xf32> to vector<8xf32>
    %16 = vector.shape_cast %15 : vector<8xf32> to vector<8x1xf32>
    %17 = tpu.reciprocal %16 {approx = true} : vector<8x1xf32> -> vector<8x1xf32>
    %18 = vector.broadcast %17 : vector<8x1xf32> to vector<8x8xf32>
    %19 = arith.mulf %14, %18 : vector<8x8xf32>
    %20 = arith.truncf %19 : vector<8x8xf32> to vector<8x8xbf16>
    %cst_11 = arith.constant dense<0.000000e+00> : vector<8x16xf32>
    %21 = tpu.matmul %20, %4, %cst_11 {dimension_numbers = #tpu.dot_dimension_numbers<[1], [0], [0], [1], [0, 0, 1, 1], [], []>} : vector<8x8xbf16>, vector<8x16xbf16>, vector<8x16xf32> -> vector<8x16xf32>
    %c0_12 = arith.constant 0 : index
    %c16 = arith.constant 16 : index
    %22 = vector.load %arg2[%c0_12, %c16] : memref<8x32xbf16, #tpu.memory_space<vmem>>, vector<8x16xbf16>
    %c0_13 = arith.constant 0 : index
    %c16_14 = arith.constant 16 : index
    %23 = vector.load %arg3[%c0_13, %c16_14] : memref<8x32xbf16, #tpu.memory_space<vmem>>, vector<8x16xbf16>
    %c0_15 = arith.constant 0 : index
    %c16_16 = arith.constant 16 : index
    %24 = vector.load %arg4[%c0_15, %c16_16] : memref<8x32xbf16, #tpu.memory_space<vmem>>, vector<8x16xbf16>
    %cst_17 = arith.constant dense<0.000000e+00> : vector<8x8xf32>
    %25 = tpu.matmul %22, %23, %cst_17 {dimension_numbers = #tpu.dot_dimension_numbers<[1], [1], [0], [0], [0, 0, 1, 0], [], []>} : vector<8x16xbf16>, vector<8x16xbf16>, vector<8x8xf32> -> vector<8x8xf32>
    %cst_18 = arith.constant 2.500000e-01 : f32
    %26 = vector.broadcast %cst_18 : f32 to vector<8x8xf32>
    %27 = arith.mulf %25, %26 : vector<8x8xf32>
    %28 = vector.broadcast %1 : vector<1x8xf32> to vector<8x8xf32>
    %29 = arith.addf %27, %28 : vector<8x8xf32>
    %cst_19 = arith.constant dense<0xFF800000> : vector<8xf32>
    %30 = vector.multi_reduction <maximumf>, %29, %cst_19 [1] : vector<8x8xf32> to vector<8xf32>
    %31 = vector.shape_cast %30 : vector<8xf32> to vector<8x1xf32>
    %32 = vector.broadcast %31 : vector<8x1xf32> to vector<8x8xf32>
    %33 = arith.subf %29, %32 : vector<8x8xf32>
    %34 = math.exp %33 : vector<8x8xf32>
    %cst_20 = arith.constant dense<0.000000e+00> : vector<8xf32>
    %35 = vector.multi_reduction <add>, %34, %cst_20 [1] : vector<8x8xf32> to vector<8xf32>
    %36 = vector.shape_cast %35 : vector<8xf32> to vector<8x1xf32>
    %37 = tpu.reciprocal %36 {approx = true} : vector<8x1xf32> -> vector<8x1xf32>
    %38 = vector.broadcast %37 : vector<8x1xf32> to vector<8x8xf32>
    %39 = arith.mulf %34, %38 : vector<8x8xf32>
    %40 = arith.truncf %39 : vector<8x8xf32> to vector<8x8xbf16>
    %cst_21 = arith.constant dense<0.000000e+00> : vector<8x16xf32>
    %41 = tpu.matmul %40, %24, %cst_21 {dimension_numbers = #tpu.dot_dimension_numbers<[1], [0], [0], [1], [0, 0, 1, 1], [], []>} : vector<8x8xbf16>, vector<8x16xbf16>, vector<8x16xf32> -> vector<8x16xf32>
    %42 = tpu.concatenate %21, %41 in 1 : vector<8x16xf32>, vector<8x16xf32> -> vector<8x32xf32>
    %43 = arith.truncf %42 : vector<8x32xf32> to vector<8x32xbf16>
    %c0_22 = arith.constant 0 : index
    %c0_23 = arith.constant 0 : index
    %44 = vector.load %arg6[%c0_22, %c0_23] : memref<8x32xbf16, #tpu.memory_space<vmem>>, vector<8x32xbf16>
    tpu.vector_store %arg6[%c0_22, %c0_23], %43 {strides = array<i32>} : memref<8x32xbf16, #tpu.memory_space<vmem>>, vector<8x32xbf16>,
    return
  }
  func.func @transform_0(%arg0: i32, %arg1: i32) -> (i32, i32) {
    %c0_i32 = arith.constant 0 : i32
    return %arg0, %arg1 : i32, i32
  }
  func.func @transform_1(%arg0: i32, %arg1: i32) -> (i32, i32) {
    %c0_i32 = arith.constant 0 : i32
    return %arg0, %arg1 : i32, i32
  }
  func.func @transform_2(%arg0: i32, %arg1: i32) -> (i32, i32) {
    %c0_i32 = arith.constant 0 : i32
    return %arg0, %arg1 : i32, i32
  }
  func.func @transform_3(%arg0: i32, %arg1: i32) -> (i32, i32, i32) {
    %c0_i32 = arith.constant 0 : i32
    %c0_i32_0 = arith.constant 0 : i32
    %c0_i32_1 = arith.constant 0 : i32
    return %arg0, %c0_i32, %c0_i32_0 : i32, i32, i32
  }
  func.func @transform_4(%arg0: i32, %arg1: i32) -> (i32, i32) {
    %c0_i32 = arith.constant 0 : i32
    return %arg0, %arg1 : i32, i32
  }
}

module attributes {stable_mosaic.version = 11 : i64} {
  func.func @_dense_qkv_kernel(%arg0: i32, %arg1: memref<16x32xbf16, #tpu.memory_space<vmem>>, %arg2: memref<32x96xbf16, #tpu.memory_space<vmem>>, %arg3: memref<1x96xf32, #tpu.memory_space<vmem>>, %arg4: memref<16x32xbf16, #tpu.memory_space<vmem>>, %arg5: memref<16x32xbf16, #tpu.memory_space<vmem>>, %arg6: memref<16x32xbf16, #tpu.memory_space<vmem>>) attributes {dimension_semantics = [#tpu.dimension_semantics<parallel>], iteration_bounds = array<i64: 1>, scalar_prefetch = 0 : i64, scratch_operands = 0 : i64, tpu.core_type = #tpu.core_type<tc>, window_params = [{transform_indices = @transform_0, window_bounds = array<i64: 16, 32>}, {pipeline_mode = #tpu.pipeline_mode<synchronous>, transform_indices = @transform_1, window_bounds = array<i64: 32, 96>}, {pipeline_mode = #tpu.pipeline_mode<synchronous>, transform_indices = @transform_2, window_bounds = array<i64: 1, 96>}, {transform_indices = @transform_3, window_bounds = array<i64: 16, 32>}, {transform_indices = @transform_4, window_bounds = array<i64: 16, 32>}, {transform_indices = @transform_5, window_bounds = array<i64: 16, 32>}]} {
    %c0 = arith.constant 0 : index
    %c0_0 = arith.constant 0 : index
    %0 = vector.load %arg1[%c0, %c0_0] : memref<16x32xbf16, #tpu.memory_space<vmem>>, vector<16x32xbf16>
    %c0_1 = arith.constant 0 : index
    %c0_2 = arith.constant 0 : index
    %1 = vector.load %arg2[%c0_1, %c0_2] : memref<32x96xbf16, #tpu.memory_space<vmem>>, vector<32x96xbf16>
    %cst = arith.constant dense<0.000000e+00> : vector<16x96xf32>
    %2 = tpu.matmul %0, %1, %cst {dimension_numbers = #tpu.dot_dimension_numbers<[1], [0], [0], [1], [0, 0, 1, 1], [], []>} : vector<16x32xbf16>, vector<32x96xbf16>, vector<16x96xf32> -> vector<16x96xf32>
    %c0_3 = arith.constant 0 : index
    %c0_4 = arith.constant 0 : index
    %3 = vector.load %arg3[%c0_3, %c0_4] : memref<1x96xf32, #tpu.memory_space<vmem>>, vector<1x96xf32>
    %4 = vector.broadcast %3 : vector<1x96xf32> to vector<16x96xf32>
    %5 = arith.addf %2, %4 : vector<16x96xf32>
    %6 = vector.extract_strided_slice %5 {offsets = [0, 0], sizes = [16, 32], strides = [1, 1]} : vector<16x96xf32> to vector<16x32xf32>
    %7 = arith.truncf %6 : vector<16x32xf32> to vector<16x32xbf16>
    %c0_5 = arith.constant 0 : index
    %c0_6 = arith.constant 0 : index
    %8 = vector.load %arg4[%c0_5, %c0_6] : memref<16x32xbf16, #tpu.memory_space<vmem>>, vector<16x32xbf16>
    tpu.vector_store %arg4[%c0_5, %c0_6], %7 {strides = array<i32>} : memref<16x32xbf16, #tpu.memory_space<vmem>>, vector<16x32xbf16>,
    %9 = vector.extract_strided_slice %5 {offsets = [0, 32], sizes = [16, 32], strides = [1, 1]} : vector<16x96xf32> to vector<16x32xf32>
    %10 = arith.truncf %9 : vector<16x32xf32> to vector<16x32xbf16>
    %c0_7 = arith.constant 0 : index
    %c0_8 = arith.constant 0 : index
    %11 = vector.load %arg5[%c0_7, %c0_8] : memref<16x32xbf16, #tpu.memory_space<vmem>>, vector<16x32xbf16>
    tpu.vector_store %arg5[%c0_7, %c0_8], %10 {strides = array<i32>} : memref<16x32xbf16, #tpu.memory_space<vmem>>, vector<16x32xbf16>,
    %12 = vector.extract_strided_slice %5 {offsets = [0, 64], sizes = [16, 32], strides = [1, 1]} : vector<16x96xf32> to vector<16x32xf32>
    %13 = arith.truncf %12 : vector<16x32xf32> to vector<16x32xbf16>
    %c0_9 = arith.constant 0 : index
    %c0_10 = arith.constant 0 : index
    %14 = vector.load %arg6[%c0_9, %c0_10] : memref<16x32xbf16, #tpu.memory_space<vmem>>, vector<16x32xbf16>
    tpu.vector_store %arg6[%c0_9, %c0_10], %13 {strides = array<i32>} : memref<16x32xbf16, #tpu.memory_space<vmem>>, vector<16x32xbf16>,
    return
  }
  func.func @transform_0(%arg0: i32) -> (i32, i32) {
    %c0_i32 = arith.constant 0 : i32
    %c0_i32_0 = arith.constant 0 : i32
    return %arg0, %c0_i32 : i32, i32
  }
  func.func @transform_1(%arg0: i32) -> (i32, i32) {
    %c0_i32 = arith.constant 0 : i32
    %c0_i32_0 = arith.constant 0 : i32
    %c0_i32_1 = arith.constant 0 : i32
    return %c0_i32, %c0_i32_0 : i32, i32
  }
  func.func @transform_2(%arg0: i32) -> (i32, i32) {
    %c0_i32 = arith.constant 0 : i32
    %c0_i32_0 = arith.constant 0 : i32
    %c0_i32_1 = arith.constant 0 : i32
    return %c0_i32, %c0_i32_0 : i32, i32
  }
  func.func @transform_3(%arg0: i32) -> (i32, i32) {
    %c0_i32 = arith.constant 0 : i32
    %c0_i32_0 = arith.constant 0 : i32
    return %arg0, %c0_i32 : i32, i32
  }
  func.func @transform_4(%arg0: i32) -> (i32, i32) {
    %c0_i32 = arith.constant 0 : i32
    %c0_i32_0 = arith.constant 0 : i32
    return %arg0, %c0_i32 : i32, i32
  }
  func.func @transform_5(%arg0: i32) -> (i32, i32) {
    %c0_i32 = arith.constant 0 : i32
    %c0_i32_0 = arith.constant 0 : i32
    return %arg0, %c0_i32 : i32, i32
  }
}

module attributes {stable_mosaic.version = 11 : i64} {
  func.func @_ln_kernel(%arg0: i32, %arg1: memref<16x32xf32, #tpu.memory_space<vmem>>, %arg2: memref<1x32xf32, #tpu.memory_space<vmem>>, %arg3: memref<1x32xf32, #tpu.memory_space<vmem>>, %arg4: memref<16x32xbf16, #tpu.memory_space<vmem>>) attributes {dimension_semantics = [#tpu.dimension_semantics<parallel>], iteration_bounds = array<i64: 1>, scalar_prefetch = 0 : i64, scratch_operands = 0 : i64, tpu.core_type = #tpu.core_type<tc>, window_params = [{transform_indices = @transform_0, window_bounds = array<i64: 16, 32>}, {pipeline_mode = #tpu.pipeline_mode<synchronous>, transform_indices = @transform_1, window_bounds = array<i64: 1, 32>}, {pipeline_mode = #tpu.pipeline_mode<synchronous>, transform_indices = @transform_2, window_bounds = array<i64: 1, 32>}, {transform_indices = @transform_3, window_bounds = array<i64: 16, 32>}]} {
    %c0 = arith.constant 0 : index
    %c0_0 = arith.constant 0 : index
    %0 = vector.load %arg1[%c0, %c0_0] : memref<16x32xf32, #tpu.memory_space<vmem>>, vector<16x32xf32>
    %cst = arith.constant dense<0.000000e+00> : vector<16xf32>
    %1 = vector.multi_reduction <add>, %0, %cst [1] : vector<16x32xf32> to vector<16xf32>
    %2 = vector.shape_cast %1 : vector<16xf32> to vector<16x1xf32>
    %cst_1 = arith.constant 3.200000e+01 : f32
    %3 = vector.broadcast %cst_1 : f32 to vector<16x1xf32>
    %4 = arith.divf %2, %3 : vector<16x1xf32>
    %5 = vector.broadcast %4 : vector<16x1xf32> to vector<16x32xf32>
    %6 = arith.subf %0, %5 : vector<16x32xf32>
    %7 = arith.mulf %6, %6 : vector<16x32xf32>
    %cst_2 = arith.constant dense<0.000000e+00> : vector<16xf32>
    %8 = vector.multi_reduction <add>, %7, %cst_2 [1] : vector<16x32xf32> to vector<16xf32>
    %9 = vector.shape_cast %8 : vector<16xf32> to vector<16x1xf32>
    %cst_3 = arith.constant 3.200000e+01 : f32
    %10 = vector.broadcast %cst_3 : f32 to vector<16x1xf32>
    %11 = arith.divf %9, %10 : vector<16x1xf32>
    %cst_4 = arith.constant 9.99999996E-13 : f32
    %12 = vector.broadcast %cst_4 : f32 to vector<16x1xf32>
    %13 = arith.addf %11, %12 : vector<16x1xf32>
    %14 = math.rsqrt %13 : vector<16x1xf32>
    %15 = vector.broadcast %14 : vector<16x1xf32> to vector<16x32xf32>
    %16 = arith.mulf %6, %15 : vector<16x32xf32>
    %c0_5 = arith.constant 0 : index
    %c0_6 = arith.constant 0 : index
    %17 = vector.load %arg2[%c0_5, %c0_6] : memref<1x32xf32, #tpu.memory_space<vmem>>, vector<1x32xf32>
    %18 = vector.broadcast %17 : vector<1x32xf32> to vector<16x32xf32>
    %19 = arith.mulf %16, %18 : vector<16x32xf32>
    %c0_7 = arith.constant 0 : index
    %c0_8 = arith.constant 0 : index
    %20 = vector.load %arg3[%c0_7, %c0_8] : memref<1x32xf32, #tpu.memory_space<vmem>>, vector<1x32xf32>
    %21 = vector.broadcast %20 : vector<1x32xf32> to vector<16x32xf32>
    %22 = arith.addf %19, %21 : vector<16x32xf32>
    %23 = arith.truncf %22 : vector<16x32xf32> to vector<16x32xbf16>
    %c0_9 = arith.constant 0 : index
    %c0_10 = arith.constant 0 : index
    %24 = vector.load %arg4[%c0_9, %c0_10] : memref<16x32xbf16, #tpu.memory_space<vmem>>, vector<16x32xbf16>
    tpu.vector_store %arg4[%c0_9, %c0_10], %23 {strides = array<i32>} : memref<16x32xbf16, #tpu.memory_space<vmem>>, vector<16x32xbf16>,
    return
  }
  func.func @transform_0(%arg0: i32) -> (i32, i32) {
    %c0_i32 = arith.constant 0 : i32
    %c0_i32_0 = arith.constant 0 : i32
    return %arg0, %c0_i32 : i32, i32
  }
  func.func @transform_1(%arg0: i32) -> (i32, i32) {
    %c0_i32 = arith.constant 0 : i32
    %c0_i32_0 = arith.constant 0 : i32
    %c0_i32_1 = arith.constant 0 : i32
    return %c0_i32, %c0_i32_0 : i32, i32
  }
  func.func @transform_2(%arg0: i32) -> (i32, i32) {
    %c0_i32 = arith.constant 0 : i32
    %c0_i32_0 = arith.constant 0 : i32
    %c0_i32_1 = arith.constant 0 : i32
    return %c0_i32, %c0_i32_0 : i32, i32
  }
  func.func @transform_3(%arg0: i32) -> (i32, i32) {
    %c0_i32 = arith.constant 0 : i32
    %c0_i32_0 = arith.constant 0 : i32
    return %arg0, %c0_i32 : i32, i32
  }
}

module attributes {stable_mosaic.version = 11 : i64} {
  func.func @_dense_ln_kernel(%arg0: i32, %arg1: memref<16x32xbf16, #tpu.memory_space<vmem>>, %arg2: memref<32x32xbf16, #tpu.memory_space<vmem>>, %arg3: memref<1x32xf32, #tpu.memory_space<vmem>>, %arg4: memref<16x32xbf16, #tpu.memory_space<vmem>>, %arg5: memref<1x32xf32, #tpu.memory_space<vmem>>, %arg6: memref<1x32xf32, #tpu.memory_space<vmem>>, %arg7: memref<16x32xbf16, #tpu.memory_space<vmem>>) attributes {dimension_semantics = [#tpu.dimension_semantics<parallel>], iteration_bounds = array<i64: 1>, scalar_prefetch = 0 : i64, scratch_operands = 0 : i64, tpu.core_type = #tpu.core_type<tc>, window_params = [{transform_indices = @transform_0, window_bounds = array<i64: 16, 32>}, {pipeline_mode = #tpu.pipeline_mode<synchronous>, transform_indices = @transform_1, window_bounds = array<i64: 32, 32>}, {pipeline_mode = #tpu.pipeline_mode<synchronous>, transform_indices = @transform_2, window_bounds = array<i64: 1, 32>}, {transform_indices = @transform_3, window_bounds = array<i64: 16, 32>}, {pipeline_mode = #tpu.pipeline_mode<synchronous>, transform_indices = @transform_4, window_bounds = array<i64: 1, 32>}, {pipeline_mode = #tpu.pipeline_mode<synchronous>, transform_indices = @transform_5, window_bounds = array<i64: 1, 32>}, {transform_indices = @transform_6, window_bounds = array<i64: 16, 32>}]} {
    %c0 = arith.constant 0 : index
    %c0_0 = arith.constant 0 : index
    %0 = vector.load %arg1[%c0, %c0_0] : memref<16x32xbf16, #tpu.memory_space<vmem>>, vector<16x32xbf16>
    %c0_1 = arith.constant 0 : index
    %c0_2 = arith.constant 0 : index
    %1 = vector.load %arg2[%c0_1, %c0_2] : memref<32x32xbf16, #tpu.memory_space<vmem>>, vector<32x32xbf16>
    %cst = arith.constant dense<0.000000e+00> : vector<16x32xf32>
    %2 = tpu.matmul %0, %1, %cst {dimension_numbers = #tpu.dot_dimension_numbers<[1], [0], [0], [1], [0, 0, 1, 1], [], []>} : vector<16x32xbf16>, vector<32x32xbf16>, vector<16x32xf32> -> vector<16x32xf32>
    %c0_3 = arith.constant 0 : index
    %c0_4 = arith.constant 0 : index
    %3 = vector.load %arg3[%c0_3, %c0_4] : memref<1x32xf32, #tpu.memory_space<vmem>>, vector<1x32xf32>
    %4 = vector.broadcast %3 : vector<1x32xf32> to vector<16x32xf32>
    %5 = arith.addf %2, %4 : vector<16x32xf32>
    %c0_5 = arith.constant 0 : index
    %c0_6 = arith.constant 0 : index
    %6 = vector.load %arg4[%c0_5, %c0_6] : memref<16x32xbf16, #tpu.memory_space<vmem>>, vector<16x32xbf16>
    %7 = arith.extf %6 : vector<16x32xbf16> to vector<16x32xf32>
    %8 = arith.addf %5, %7 : vector<16x32xf32>
    %cst_7 = arith.constant dense<0.000000e+00> : vector<16xf32>
    %9 = vector.multi_reduction <add>, %8, %cst_7 [1] : vector<16x32xf32> to vector<16xf32>
    %10 = vector.shape_cast %9 : vector<16xf32> to vector<16x1xf32>
    %cst_8 = arith.constant 3.200000e+01 : f32
    %11 = vector.broadcast %cst_8 : f32 to vector<16x1xf32>
    %12 = arith.divf %10, %11 : vector<16x1xf32>
    %13 = vector.broadcast %12 : vector<16x1xf32> to vector<16x32xf32>
    %14 = arith.subf %8, %13 : vector<16x32xf32>
    %15 = arith.mulf %14, %14 : vector<16x32xf32>
    %cst_9 = arith.constant dense<0.000000e+00> : vector<16xf32>
    %16 = vector.multi_reduction <add>, %15, %cst_9 [1] : vector<16x32xf32> to vector<16xf32>
    %17 = vector.shape_cast %16 : vector<16xf32> to vector<16x1xf32>
    %cst_10 = arith.constant 3.200000e+01 : f32
    %18 = vector.broadcast %cst_10 : f32 to vector<16x1xf32>
    %19 = arith.divf %17, %18 : vector<16x1xf32>
    %cst_11 = arith.constant 9.99999996E-13 : f32
    %20 = vector.broadcast %cst_11 : f32 to vector<16x1xf32>
    %21 = arith.addf %19, %20 : vector<16x1xf32>
    %22 = math.rsqrt %21 : vector<16x1xf32>
    %23 = vector.broadcast %22 : vector<16x1xf32> to vector<16x32xf32>
    %24 = arith.mulf %14, %23 : vector<16x32xf32>
    %c0_12 = arith.constant 0 : index
    %c0_13 = arith.constant 0 : index
    %25 = vector.load %arg5[%c0_12, %c0_13] : memref<1x32xf32, #tpu.memory_space<vmem>>, vector<1x32xf32>
    %26 = vector.broadcast %25 : vector<1x32xf32> to vector<16x32xf32>
    %27 = arith.mulf %24, %26 : vector<16x32xf32>
    %c0_14 = arith.constant 0 : index
    %c0_15 = arith.constant 0 : index
    %28 = vector.load %arg6[%c0_14, %c0_15] : memref<1x32xf32, #tpu.memory_space<vmem>>, vector<1x32xf32>
    %29 = vector.broadcast %28 : vector<1x32xf32> to vector<16x32xf32>
    %30 = arith.addf %27, %29 : vector<16x32xf32>
    %31 = arith.truncf %30 : vector<16x32xf32> to vector<16x32xbf16>
    %c0_16 = arith.constant 0 : index
    %c0_17 = arith.constant 0 : index
    %32 = vector.load %arg7[%c0_16, %c0_17] : memref<16x32xbf16, #tpu.memory_space<vmem>>, vector<16x32xbf16>
    tpu.vector_store %arg7[%c0_16, %c0_17], %31 {strides = array<i32>} : memref<16x32xbf16, #tpu.memory_space<vmem>>, vector<16x32xbf16>,
    return
  }
  func.func @transform_0(%arg0: i32) -> (i32, i32) {
    %c0_i32 = arith.constant 0 : i32
    %c0_i32_0 = arith.constant 0 : i32
    return %arg0, %c0_i32 : i32, i32
  }
  func.func @transform_1(%arg0: i32) -> (i32, i32) {
    %c0_i32 = arith.constant 0 : i32
    %c0_i32_0 = arith.constant 0 : i32
    %c0_i32_1 = arith.constant 0 : i32
    return %c0_i32, %c0_i32_0 : i32, i32
  }
  func.func @transform_2(%arg0: i32) -> (i32, i32) {
    %c0_i32 = arith.constant 0 : i32
    %c0_i32_0 = arith.constant 0 : i32
    %c0_i32_1 = arith.constant 0 : i32
    return %c0_i32, %c0_i32_0 : i32, i32
  }
  func.func @transform_3(%arg0: i32) -> (i32, i32) {
    %c0_i32 = arith.constant 0 : i32
    %c0_i32_0 = arith.constant 0 : i32
    return %arg0, %c0_i32 : i32, i32
  }
  func.func @transform_4(%arg0: i32) -> (i32, i32) {
    %c0_i32 = arith.constant 0 : i32
    %c0_i32_0 = arith.constant 0 : i32
    %c0_i32_1 = arith.constant 0 : i32
    return %c0_i32, %c0_i32_0 : i32, i32
  }
  func.func @transform_5(%arg0: i32) -> (i32, i32) {
    %c0_i32 = arith.constant 0 : i32
    %c0_i32_0 = arith.constant 0 : i32
    %c0_i32_1 = arith.constant 0 : i32
    return %c0_i32, %c0_i32_0 : i32, i32
  }
  func.func @transform_6(%arg0: i32) -> (i32, i32) {
    %c0_i32 = arith.constant 0 : i32
    %c0_i32_0 = arith.constant 0 : i32
    return %arg0, %c0_i32 : i32, i32
  }
}

module attributes {stable_mosaic.version = 11 : i64} {
  func.func @_dense_kernel(%arg0: i32, %arg1: memref<16x32xbf16, #tpu.memory_space<vmem>>, %arg2: memref<32x64xbf16, #tpu.memory_space<vmem>>, %arg3: memref<1x64xf32, #tpu.memory_space<vmem>>, %arg4: memref<16x64xbf16, #tpu.memory_space<vmem>>) attributes {dimension_semantics = [#tpu.dimension_semantics<parallel>], iteration_bounds = array<i64: 1>, scalar_prefetch = 0 : i64, scratch_operands = 0 : i64, tpu.core_type = #tpu.core_type<tc>, window_params = [{transform_indices = @transform_0, window_bounds = array<i64: 16, 32>}, {pipeline_mode = #tpu.pipeline_mode<synchronous>, transform_indices = @transform_1, window_bounds = array<i64: 32, 64>}, {pipeline_mode = #tpu.pipeline_mode<synchronous>, transform_indices = @transform_2, window_bounds = array<i64: 1, 64>}, {transform_indices = @transform_3, window_bounds = array<i64: 16, 64>}]} {
    %c0 = arith.constant 0 : index
    %c0_0 = arith.constant 0 : index
    %0 = vector.load %arg1[%c0, %c0_0] : memref<16x32xbf16, #tpu.memory_space<vmem>>, vector<16x32xbf16>
    %c0_1 = arith.constant 0 : index
    %c0_2 = arith.constant 0 : index
    %1 = vector.load %arg2[%c0_1, %c0_2] : memref<32x64xbf16, #tpu.memory_space<vmem>>, vector<32x64xbf16>
    %cst = arith.constant dense<0.000000e+00> : vector<16x64xf32>
    %2 = tpu.matmul %0, %1, %cst {dimension_numbers = #tpu.dot_dimension_numbers<[1], [0], [0], [1], [0, 0, 1, 1], [], []>} : vector<16x32xbf16>, vector<32x64xbf16>, vector<16x64xf32> -> vector<16x64xf32>
    %c0_3 = arith.constant 0 : index
    %c0_4 = arith.constant 0 : index
    %3 = vector.load %arg3[%c0_3, %c0_4] : memref<1x64xf32, #tpu.memory_space<vmem>>, vector<1x64xf32>
    %4 = vector.broadcast %3 : vector<1x64xf32> to vector<16x64xf32>
    %5 = arith.addf %2, %4 : vector<16x64xf32>
    %cst_5 = arith.constant 5.000000e-01 : f32
    %6 = vector.broadcast %cst_5 : f32 to vector<16x64xf32>
    %7 = arith.mulf %6, %5 : vector<16x64xf32>
    %cst_6 = arith.constant 4.471500e-02 : f32
    %8 = vector.broadcast %cst_6 : f32 to vector<16x64xf32>
    %9 = arith.mulf %8, %5 : vector<16x64xf32>
    %10 = arith.mulf %9, %5 : vector<16x64xf32>
    %11 = arith.mulf %10, %5 : vector<16x64xf32>
    %12 = arith.addf %5, %11 : vector<16x64xf32>
    %cst_7 = arith.constant 0.797884583 : f32
    %13 = vector.broadcast %cst_7 : f32 to vector<16x64xf32>
    %14 = arith.mulf %13, %12 : vector<16x64xf32>
    %15 = math.tanh %14 : vector<16x64xf32>
    %cst_8 = arith.constant 1.000000e+00 : f32
    %16 = vector.broadcast %cst_8 : f32 to vector<16x64xf32>
    %17 = arith.addf %16, %15 : vector<16x64xf32>
    %18 = arith.mulf %7, %17 : vector<16x64xf32>
    %19 = arith.truncf %18 : vector<16x64xf32> to vector<16x64xbf16>
    %c0_9 = arith.constant 0 : index
    %c0_10 = arith.constant 0 : index
    %20 = vector.load %arg4[%c0_9, %c0_10] : memref<16x64xbf16, #tpu.memory_space<vmem>>, vector<16x64xbf16>
    tpu.vector_store %arg4[%c0_9, %c0_10], %19 {strides = array<i32>} : memref<16x64xbf16, #tpu.memory_space<vmem>>, vector<16x64xbf16>,
    return
  }
  func.func @transform_0(%arg0: i32) -> (i32, i32) {
    %c0_i32 = arith.constant 0 : i32
    %c0_i32_0 = arith.constant 0 : i32
    return %arg0, %c0_i32 : i32, i32
  }
  func.func @transform_1(%arg0: i32) -> (i32, i32) {
    %c0_i32 = arith.constant 0 : i32
    %c0_i32_0 = arith.constant 0 : i32
    %c0_i32_1 = arith.constant 0 : i32
    return %c0_i32, %c0_i32_0 : i32, i32
  }
  func.func @transform_2(%arg0: i32) -> (i32, i32) {
    %c0_i32 = arith.constant 0 : i32
    %c0_i32_0 = arith.constant 0 : i32
    %c0_i32_1 = arith.constant 0 : i32
    return %c0_i32, %c0_i32_0 : i32, i32
  }
  func.func @transform_3(%arg0: i32) -> (i32, i32) {
    %c0_i32 = arith.constant 0 : i32
    %c0_i32_0 = arith.constant 0 : i32
    return %arg0, %c0_i32 : i32, i32
  }
}

module attributes {stable_mosaic.version = 11 : i64} {
  func.func @_dense_ln_kernel(%arg0: i32, %arg1: memref<16x64xbf16, #tpu.memory_space<vmem>>, %arg2: memref<64x32xbf16, #tpu.memory_space<vmem>>, %arg3: memref<1x32xf32, #tpu.memory_space<vmem>>, %arg4: memref<16x32xbf16, #tpu.memory_space<vmem>>, %arg5: memref<1x32xf32, #tpu.memory_space<vmem>>, %arg6: memref<1x32xf32, #tpu.memory_space<vmem>>, %arg7: memref<16x32xbf16, #tpu.memory_space<vmem>>) attributes {dimension_semantics = [#tpu.dimension_semantics<parallel>], iteration_bounds = array<i64: 1>, scalar_prefetch = 0 : i64, scratch_operands = 0 : i64, tpu.core_type = #tpu.core_type<tc>, window_params = [{transform_indices = @transform_0, window_bounds = array<i64: 16, 64>}, {pipeline_mode = #tpu.pipeline_mode<synchronous>, transform_indices = @transform_1, window_bounds = array<i64: 64, 32>}, {pipeline_mode = #tpu.pipeline_mode<synchronous>, transform_indices = @transform_2, window_bounds = array<i64: 1, 32>}, {transform_indices = @transform_3, window_bounds = array<i64: 16, 32>}, {pipeline_mode = #tpu.pipeline_mode<synchronous>, transform_indices = @transform_4, window_bounds = array<i64: 1, 32>}, {pipeline_mode = #tpu.pipeline_mode<synchronous>, transform_indices = @transform_5, window_bounds = array<i64: 1, 32>}, {transform_indices = @transform_6, window_bounds = array<i64: 16, 32>}]} {
    %c0 = arith.constant 0 : index
    %c0_0 = arith.constant 0 : index
    %0 = vector.load %arg1[%c0, %c0_0] : memref<16x64xbf16, #tpu.memory_space<vmem>>, vector<16x64xbf16>
    %c0_1 = arith.constant 0 : index
    %c0_2 = arith.constant 0 : index
    %1 = vector.load %arg2[%c0_1, %c0_2] : memref<64x32xbf16, #tpu.memory_space<vmem>>, vector<64x32xbf16>
    %cst = arith.constant dense<0.000000e+00> : vector<16x32xf32>
    %2 = tpu.matmul %0, %1, %cst {dimension_numbers = #tpu.dot_dimension_numbers<[1], [0], [0], [1], [0, 0, 1, 1], [], []>} : vector<16x64xbf16>, vector<64x32xbf16>, vector<16x32xf32> -> vector<16x32xf32>
    %c0_3 = arith.constant 0 : index
    %c0_4 = arith.constant 0 : index
    %3 = vector.load %arg3[%c0_3, %c0_4] : memref<1x32xf32, #tpu.memory_space<vmem>>, vector<1x32xf32>
    %4 = vector.broadcast %3 : vector<1x32xf32> to vector<16x32xf32>
    %5 = arith.addf %2, %4 : vector<16x32xf32>
    %c0_5 = arith.constant 0 : index
    %c0_6 = arith.constant 0 : index
    %6 = vector.load %arg4[%c0_5, %c0_6] : memref<16x32xbf16, #tpu.memory_space<vmem>>, vector<16x32xbf16>
    %7 = arith.extf %6 : vector<16x32xbf16> to vector<16x32xf32>
    %8 = arith.addf %5, %7 : vector<16x32xf32>
    %cst_7 = arith.constant dense<0.000000e+00> : vector<16xf32>
    %9 = vector.multi_reduction <add>, %8, %cst_7 [1] : vector<16x32xf32> to vector<16xf32>
    %10 = vector.shape_cast %9 : vector<16xf32> to vector<16x1xf32>
    %cst_8 = arith.constant 3.200000e+01 : f32
    %11 = vector.broadcast %cst_8 : f32 to vector<16x1xf32>
    %12 = arith.divf %10, %11 : vector<16x1xf32>
    %13 = vector.broadcast %12 : vector<16x1xf32> to vector<16x32xf32>
    %14 = arith.subf %8, %13 : vector<16x32xf32>
    %15 = arith.mulf %14, %14 : vector<16x32xf32>
    %cst_9 = arith.constant dense<0.000000e+00> : vector<16xf32>
    %16 = vector.multi_reduction <add>, %15, %cst_9 [1] : vector<16x32xf32> to vector<16xf32>
    %17 = vector.shape_cast %16 : vector<16xf32> to vector<16x1xf32>
    %cst_10 = arith.constant 3.200000e+01 : f32
    %18 = vector.broadcast %cst_10 : f32 to vector<16x1xf32>
    %19 = arith.divf %17, %18 : vector<16x1xf32>
    %cst_11 = arith.constant 9.99999996E-13 : f32
    %20 = vector.broadcast %cst_11 : f32 to vector<16x1xf32>
    %21 = arith.addf %19, %20 : vector<16x1xf32>
    %22 = math.rsqrt %21 : vector<16x1xf32>
    %23 = vector.broadcast %22 : vector<16x1xf32> to vector<16x32xf32>
    %24 = arith.mulf %14, %23 : vector<16x32xf32>
    %c0_12 = arith.constant 0 : index
    %c0_13 = arith.constant 0 : index
    %25 = vector.load %arg5[%c0_12, %c0_13] : memref<1x32xf32, #tpu.memory_space<vmem>>, vector<1x32xf32>
    %26 = vector.broadcast %25 : vector<1x32xf32> to vector<16x32xf32>
    %27 = arith.mulf %24, %26 : vector<16x32xf32>
    %c0_14 = arith.constant 0 : index
    %c0_15 = arith.constant 0 : index
    %28 = vector.load %arg6[%c0_14, %c0_15] : memref<1x32xf32, #tpu.memory_space<vmem>>, vector<1x32xf32>
    %29 = vector.broadcast %28 : vector<1x32xf32> to vector<16x32xf32>
    %30 = arith.addf %27, %29 : vector<16x32xf32>
    %31 = arith.truncf %30 : vector<16x32xf32> to vector<16x32xbf16>
    %c0_16 = arith.constant 0 : index
    %c0_17 = arith.constant 0 : index
    %32 = vector.load %arg7[%c0_16, %c0_17] : memref<16x32xbf16, #tpu.memory_space<vmem>>, vector<16x32xbf16>
    tpu.vector_store %arg7[%c0_16, %c0_17], %31 {strides = array<i32>} : memref<16x32xbf16, #tpu.memory_space<vmem>>, vector<16x32xbf16>,
    return
  }
  func.func @transform_0(%arg0: i32) -> (i32, i32) {
    %c0_i32 = arith.constant 0 : i32
    %c0_i32_0 = arith.constant 0 : i32
    return %arg0, %c0_i32 : i32, i32
  }
  func.func @transform_1(%arg0: i32) -> (i32, i32) {
    %c0_i32 = arith.constant 0 : i32
    %c0_i32_0 = arith.constant 0 : i32
    %c0_i32_1 = arith.constant 0 : i32
    return %c0_i32, %c0_i32_0 : i32, i32
  }
  func.func @transform_2(%arg0: i32) -> (i32, i32) {
    %c0_i32 = arith.constant 0 : i32
    %c0_i32_0 = arith.constant 0 : i32
    %c0_i32_1 = arith.constant 0 : i32
    return %c0_i32, %c0_i32_0 : i32, i32
  }
  func.func @transform_3(%arg0: i32) -> (i32, i32) {
    %c0_i32 = arith.constant 0 : i32
    %c0_i32_0 = arith.constant 0 : i32
    return %arg0, %c0_i32 : i32, i32
  }
  func.func @transform_4(%arg0: i32) -> (i32, i32) {
    %c0_i32 = arith.constant 0 : i32
    %c0_i32_0 = arith.constant 0 : i32
    %c0_i32_1 = arith.constant 0 : i32
    return %c0_i32, %c0_i32_0 : i32, i32
  }
  func.func @transform_5(%arg0: i32) -> (i32, i32) {
    %c0_i32 = arith.constant 0 : i32
    %c0_i32_0 = arith.constant 0 : i32
    %c0_i32_1 = arith.constant 0 : i32
    return %c0_i32, %c0_i32_0 : i32, i32
  }
  func.func @transform_6(%arg0: i32) -> (i32, i32) {
    %c0_i32 = arith.constant 0 : i32
    %c0_i32_0 = arith.constant 0 : i32
    return %arg0, %c0_i32 : i32, i32
  }
}

</mosaic_0001>

<llo_original>
// kernel: bert_classifier_forward.14
$region0: #{bert_classifier_forward.14}
  #allocation0 [shape = 'u32[]', space=smem, size = 0x4, offset = 0x4, fixed_abs, tag = 'smem constant byte address 0x4 - core index']
  #allocation1 [shape = 'u32[144,128]{1,0:T(1,128)}', space=vmem, size = 0x12000, scoped, tag = 'internal scratch']
  %s0 = inlined_call_operand.hbm [shape: bf16[16,32], index: 0, kind: input, shape index: {}]
  %s1 = inlined_call_operand.hbm [shape: bf16[32,32], index: 1, kind: input, shape index: {}]
  %s2 = inlined_call_operand.hbm [shape: f32[1,32], index: 2, kind: input, shape index: {}]
  %s3 = inlined_call_operand.hbm [shape: bf16[16,32], index: 3, kind: input, shape index: {}]
  %s4 = inlined_call_operand.hbm [shape: f32[1,32], index: 4, kind: input, shape index: {}]
  %s5 = inlined_call_operand.hbm [shape: f32[1,32], index: 5, kind: input, shape index: {}]
  %s6 = inlined_call_operand.hbm [shape: bf16[16,32], index: 6, kind: output, shape index: {}]
  %s7 = sld [smem:[#allocation0]]
  $region58: #{bert_classifier_forward.14} parent=0
    _
  %s9 = ssub.s32 1, %s7
  %s10 = scalar_select 0, %s9, %s7
  $region1: #{bert_classifier_forward.14} parent=0
    #allocation2 [shape = 'u8[4096]{0}', space=vmem, size = 0x1000, scoped, tag = 'input window, operand 0, single buffered']
    #allocation3 [shape = 's32[1]{0}', space=sflag, size = 0x4, scoped, tag = 'scoped memory for bert_classifier_forward.14']
    #allocation4 [shape = 's32[1]{0}', space=sflag, size = 0x4, scoped, tag = 'scoped memory for bert_classifier_forward.14']
    #allocation5 [shape = 'u8[8192]{0}', space=vmem, size = 0x2000, scoped, tag = 'input window, operand 1, single buffered']
    #allocation6 [shape = 's32[1]{0}', space=sflag, size = 0x4, scoped, tag = 'scoped memory for bert_classifier_forward.14']
    #allocation7 [shape = 'u8[512]{0}', space=vmem, size = 0x400, scoped, tag = 'input window, operand 2, single buffered']
    #allocation8 [shape = 'u8[4096]{0}', space=vmem, size = 0x1000, scoped, tag = 'input window, operand 3, single buffered']
    #allocation9 [shape = 's32[1]{0}', space=sflag, size = 0x4, scoped, tag = 'scoped memory for bert_classifier_forward.14']
    #allocation10 [shape = 'u8[512]{0}', space=vmem, size = 0x400, scoped, tag = 'input window, operand 4, single buffered']
    #allocation11 [shape = 'u8[512]{0}', space=vmem, size = 0x400, scoped, tag = 'input window, operand 5, single buffered']
    #allocation12 [shape = 's32[1]{0}', space=sflag, size = 0x4, scoped, tag = 'scoped memory for bert_classifier_forward.14']
    #allocation13 [shape = 'u8[4096]{0}', space=vmem, size = 0x1000, scoped, tag = 'output window, operand 0, single buffered']
    %11 = vsyncpa [#allocation3], 0
    %12 = vsyncpa [#allocation6], 0
    %13 = vsyncpa [#allocation9], 0
    %14 = vsyncpa [#allocation12], 0
    %15 = vsyncpa [#allocation4], 0
    // Predicated region
    $region2: #{bert_classifier_forward.14} parent=1 // pred_check
      _
    $region3: #{bert_classifier_forward.14} parent=1 // pred_check_branch
      %17 = sbr.rel (0) target = $region5
    $region4: #{bert_classifier_forward.14} parent=1 // pred_region
      %s19 = ssub.s32 128, 128
      %20 = vsyncadd [#allocation3], %s19
      %s21 = sshll.u32 [#allocation2], 4
      %s22 = int_to_ptr.vmem [resolvable:$true] %s21
      %27 = dma.hbm_to_vmem [thread:$0]  %s0, 128, %s22, [#allocation3], 64, 64, 4
    $region5: #{bert_classifier_forward.14} parent=1 // pred_fallthru
      _
    // Predicated region
    $region6: #{bert_classifier_forward.14} parent=1 // pred_check
      _
    $region7: #{bert_classifier_forward.14} parent=1 // pred_check_branch
      %29 = sbr.rel (0) target = $region9
    $region8: #{bert_classifier_forward.14} parent=1 // pred_region
      %s31 = ssub.s32 256, 256
      %32 = vsyncadd [#allocation6], %s31
      %s33 = sshll.u32 [#allocation5], 4
      %s34 = int_to_ptr.vmem [resolvable:$true] %s33
      %39 = dma.hbm_to_vmem [thread:$0]  %s1, 256, %s34, [#allocation6], 64, 64, 4
    $region9: #{bert_classifier_forward.14} parent=1 // pred_fallthru
      _
    // Predicated region
    $region10: #{bert_classifier_forward.14} parent=1 // pred_check
      _
    $region11: #{bert_classifier_forward.14} parent=1 // pred_check_branch
      %41 = sbr.rel (0) target = $region13
    $region12: #{bert_classifier_forward.14} parent=1 // pred_region
      %s43 = ssub.s32 16, 16
      %44 = vsyncadd [#allocation6], %s43
      %s46 = sshll.u32 [#allocation7], 4
      %s47 = int_to_ptr.vmem [resolvable:$true] %s46
      %49 = dma.hbm_to_vmem [thread:$0]  %s2, 16, %s47, [#allocation6]
    $region13: #{bert_classifier_forward.14} parent=1 // pred_fallthru
      _
    // Predicated region
    $region14: #{bert_classifier_forward.14} parent=1 // pred_check
      _
    $region15: #{bert_classifier_forward.14} parent=1 // pred_check_branch
      %51 = sbr.rel (0) target = $region17
    $region16: #{bert_classifier_forward.14} parent=1 // pred_region
      %s53 = ssub.s32 128, 128
      %54 = vsyncadd [#allocation9], %s53
      %s55 = sshll.u32 [#allocation8], 4
      %s56 = int_to_ptr.vmem [resolvable:$true] %s55
      %61 = dma.hbm_to_vmem [thread:$0]  %s3, 128, %s56, [#allocation9], 64, 64, 4
    $region17: #{bert_classifier_forward.14} parent=1 // pred_fallthru
      _
    // Predicated region
    $region18: #{bert_classifier_forward.14} parent=1 // pred_check
      _
    $region19: #{bert_classifier_forward.14} parent=1 // pred_check_branch
      %63 = sbr.rel (0) target = $region21
    $region20: #{bert_classifier_forward.14} parent=1 // pred_region
      %s65 = ssub.s32 16, 16
      %66 = vsyncadd [#allocation9], %s65
      %s68 = sshll.u32 [#allocation10], 4
      %s69 = int_to_ptr.vmem [resolvable:$true] %s68
      %71 = dma.hbm_to_vmem [thread:$0]  %s4, 16, %s69, [#allocation9]
    $region21: #{bert_classifier_forward.14} parent=1 // pred_fallthru
      _
    // Predicated region
    $region22: #{bert_classifier_forward.14} parent=1 // pred_check
      _
    $region23: #{bert_classifier_forward.14} parent=1 // pred_check_branch
      %73 = sbr.rel (0) target = $region25
    $region24: #{bert_classifier_forward.14} parent=1 // pred_region
      %s75 = ssub.s32 16, 16
      %76 = vsyncadd [#allocation12], %s75
      %s78 = sshll.u32 [#allocation11], 4
      %s79 = int_to_ptr.vmem [resolvable:$true] %s78
      %81 = dma.hbm_to_vmem [thread:$0]  %s5, 16, %s79, [#allocation12]
    $region25: #{bert_classifier_forward.14} parent=1 // pred_fallthru
      _
    // Predicated region
    $region26: #{bert_classifier_forward.14} parent=1 // pred_check
      _
    $region27: #{bert_classifier_forward.14} parent=1 // pred_check_branch
      %83 = sbr.rel (0) target = $region29
    $region28: #{bert_classifier_forward.14} parent=1 // pred_region
      %84 = dma.done [#allocation3], 128
    $region29: #{bert_classifier_forward.14} parent=1 // pred_fallthru
      _
    // Predicated region
    $region30: #{bert_classifier_forward.14} parent=1 // pred_check
      _
    $region31: #{bert_classifier_forward.14} parent=1 // pred_check_branch
      %86 = sbr.rel (0) target = $region33
    $region32: #{bert_classifier_forward.14} parent=1 // pred_region
      %87 = dma.done [#allocation6], 256
    $region33: #{bert_classifier_forward.14} parent=1 // pred_fallthru
      _
    // Predicated region
    $region34: #{bert_classifier_forward.14} parent=1 // pred_check
      _
    $region35: #{bert_classifier_forward.14} parent=1 // pred_check_branch
      %89 = sbr.rel (0) target = $region37
    $region36: #{bert_classifier_forward.14} parent=1 // pred_region
      %90 = dma.done [#allocation6], 16
    $region37: #{bert_classifier_forward.14} parent=1 // pred_fallthru
      _
    // Predicated region
    $region38: #{bert_classifier_forward.14} parent=1 // pred_check
      _
    $region39: #{bert_classifier_forward.14} parent=1 // pred_check_branch
      %92 = sbr.rel (0) target = $region41
    $region40: #{bert_classifier_forward.14} parent=1 // pred_region
      %93 = dma.done [#allocation9], 128
    $region41: #{bert_classifier_forward.14} parent=1 // pred_fallthru
      _
    // Predicated region
    $region42: #{bert_classifier_forward.14} parent=1 // pred_check
      _
    $region43: #{bert_classifier_forward.14} parent=1 // pred_check_branch
      %95 = sbr.rel (0) target = $region45
    $region44: #{bert_classifier_forward.14} parent=1 // pred_region
      %96 = dma.done [#allocation9], 16
    $region45: #{bert_classifier_forward.14} parent=1 // pred_fallthru
      _
    // Predicated region
    $region46: #{bert_classifier_forward.14} parent=1 // pred_check
      _
    $region47: #{bert_classifier_forward.14} parent=1 // pred_check_branch
      %98 = sbr.rel (0) target = $region49
    $region48: #{bert_classifier_forward.14} parent=1 // pred_region
      %99 = dma.done [#allocation12], 16
    $region49: #{bert_classifier_forward.14} parent=1 // pred_fallthru
      _
    %v101 = vld [vmem:[#allocation2] sm:$0xf]
    %v102 = vld [vmem:[#allocation2 + $0x4] sm:$0xf]
    %v103 = vld [vmem:[#allocation5] sm:$0xf]
    %v104 = vld [vmem:[#allocation5 + $0x4] sm:$0xf]
    %v105 = vld [vmem:[#allocation5 + $0x8] sm:$0xf]
    %v106 = vld [vmem:[#allocation5 + $0xc] sm:$0xf]
    %v107 = vld [vmem:[#allocation7] sm:$0x1]
    %v109 = vlaneseq
    %v110 = vshrl.u32 %v109, 7
    %v111 = vsub.s32 0, %v110
    %v112 = vrot.slane %v107, %v111
    %v116 = vunpack.c.l.b16 %v101
    %v117 = vunpack.c.l.b16 %v102
    %v118 = vpack.c.b16 %v117, %v116
    %v123 = vunpack.c.l.b16 %v103
    %v124 = vunpack.c.l.b16 %v104
    %v125 = vunpack.c.l.b16 %v105
    %v126 = vunpack.c.l.b16 %v106
    %v127 = vpack.c.b16 %v124, %v123
    %v128 = vpack.c.b16 %v126, %v125
    %vm131 = vcmask 261120
    %v133 = vsel %vm131, %v118, 0
    %135 = vmatprep.subr.bf16.mxu0 0
    %136 = vmatpush1.bf16.msra.mxu0 %v127
    %137 = vmatprep.subr.bf16.mxu0 0
    %138 = vmatpush1.bf16.msra.mxu0 %v128
    %139 = vmatprep.subr.bf16.mxu0 0
    %140 = vmatpush1.bf16.msra.mxu0 0
    %141 = vmatprep.subr.bf16.mxu0 0
    %142 = vmatpush1.bf16.msra.mxu0 0
    %143 = vmatprep.subr.bf16.mxu0 0
    %144 = vmatpush1.bf16.msra.mxu0 0
    %145 = vmatprep.subr.bf16.mxu0 0
    %146 = vmatpush1.bf16.msra.mxu0 0
    %147 = vmatprep.subr.bf16.mxu0 0
    %148 = vmatpush1.bf16.msra.mxu0 0
    %149 = vmatprep.subr.bf16.mxu0 0
    %150 = vmatpush1.bf16.msra.mxu0 0
    %151 = vmatprep.subr.bf16.mxu0 0
    %152 = vmatpush1.bf16.msra.mxu0 0
    %153 = vmatprep.subr.bf16.mxu0 0
    %154 = vmatpush1.bf16.msra.mxu0 0
    %155 = vmatprep.subr.bf16.mxu0 0
    %156 = vmatpush1.bf16.msra.mxu0 0
    %157 = vmatprep.subr.bf16.mxu0 0
    %158 = vmatpush1.bf16.msra.mxu0 0
    %159 = vmatprep.subr.bf16.mxu0 0
    %160 = vmatpush1.bf16.msra.mxu0 0
    %161 = vmatprep.subr.bf16.mxu0 0
    %162 = vmatpush1.bf16.msra.mxu0 0
    %163 = vmatprep.subr.bf16.mxu0 0
    %164 = vmatpush1.bf16.msra.mxu0 0
    %165 = vmatprep.subr.bf16.mxu0 0
    %166 = vmatpush1.bf16.msra.mxu0 0
    %167 = vmatprep.mubr.bf16.mxu0 0
    %168 = vmatmul.mubr.bf16.gmra.mrb[0].mxu0 %v133
    %v169 = vpop.f32.mrb[0].mxu0
    %v170 = vadd.f32 %v112, %v169
    %v171 = vpop.f32.mrb[0].mxu0
    %v172 = vpop.f32.mrb[0].mxu0
    %v173 = vadd.f32 %v112, %v172
    %v174 = vpop.f32.mrb[0].mxu0
    %175 = vdwg.mxu0
    %v176 = vld [vmem:[#allocation8] sm:$0xf]
    %v177 = vld [vmem:[#allocation8 + $0x4] sm:$0xf]
    %v178 = vunpack.c.l.bf16 %v176
    %v179 = vunpack.c.l.bf16 %v177
    %v180 = vadd.f32 %v170, %v178
    %v181 = vadd.f32 %v173, %v179
    %v182 = vsel %vm131, %v180, 0.0
    %183 = vadd.xlane.f32.xlu0 %v182
    %v184 = vpop.xlane.xlu0 %183
    %v185 = vsel %vm131, %v181, 0.0
    %186 = vadd.xlane.f32.xlu0 %v185
    %v187 = vpop.xlane.xlu0 %186
    %v188 = vrcp.pop 32.0
    %v189 = vmul.f32 %v184, %v188
    %v190 = vmul.f32 %v187, %v188
    %v191 = vsub.f32 %v180, %v189
    %v192 = vsub.f32 %v181, %v190
    %v193 = vmul.f32 %v191, %v191
    %v194 = vmul.f32 %v192, %v192
    %v195 = vsel %vm131, %v193, 0.0
    %196 = vadd.xlane.f32.xlu0 %v195
    %v197 = vpop.xlane.xlu0 %196
    %v198 = vsel %vm131, %v194, 0.0
    %199 = vadd.xlane.f32.xlu0 %v198
    %v200 = vpop.xlane.xlu0 %199
    %v201 = vmul.f32 %v197, %v188
    %v202 = vmul.f32 %v200, %v188
    %v203 = vadd.f32 %v201, 1e-12
    %v204 = vadd.f32 %v202, 1e-12
    %v205 = vrsqrt.pop %v203
    %v206 = vrsqrt.pop %v204
    %v207 = vmul.f32 %v191, %v205
    %v208 = vmul.f32 %v192, %v206
    %v209 = vld [vmem:[#allocation10] sm:$0x1]
    %v211 = vlaneseq
    %v212 = vshrl.u32 %v211, 7
    %v213 = vsub.s32 0, %v212
    %v214 = vrot.slane %v209, %v213
    %v216 = vmul.f32 %v207, %v214
    %v217 = vmul.f32 %v208, %v214
    %v218 = vld [vmem:[#allocation11] sm:$0x1]
    %v220 = vlaneseq
    %v221 = vshrl.u32 %v220, 7
    %v222 = vsub.s32 0, %v221
    %v223 = vrot.slane %v218, %v222
    %v225 = vadd.f32 %v216, %v223
    %v226 = vadd.f32 %v217, %v223
    %v227 = vpack.c.bf16 %v226, %v225
    %v229 = vunpack.c.l.b16 %v227
    %v230 = vunpack.c.h.b16 %v227
    %v231 = vpack.c.b16 %v229, %v229
    %v232 = vpack.c.b16 %v230, %v230
    %vm235 = vcmask 257024
    %236 = vst.msk [vmem:[#allocation13] sm:$0xf] %vm235, %v231
    %237 = vst.msk [vmem:[#allocation13 + $0x4] sm:$0xf] %vm235, %v232
    // Predicated region
    $region50: #{bert_classifier_forward.14} parent=1 // pred_check
      _
    $region51: #{bert_classifier_forward.14} parent=1 // pred_check_branch
      %239 = sbr.rel (0) target = $region53
    $region52: #{bert_classifier_forward.14} parent=1 // pred_region
      %s241 = ssub.s32 128, 128
      %242 = vsyncadd [#allocation4], %s241
      %s243 = sshll.u32 [#allocation13], 4
      %s244 = int_to_ptr.vmem [resolvable:$true] %s243
      %249 = dma.vmem_to_hbm [thread:$0]  %s244, 128, %s6, [#allocation4], 64, 64, 4
    $region53: #{bert_classifier_forward.14} parent=1 // pred_fallthru
      _
    // Predicated region
    $region54: #{bert_classifier_forward.14} parent=1 // pred_check
      _
    $region55: #{bert_classifier_forward.14} parent=1 // pred_check_branch
      %251 = sbr.rel (0) target = $region57
    $region56: #{bert_classifier_forward.14} parent=1 // pred_region
      %252 = dma.done [#allocation4], 128
    $region57: #{bert_classifier_forward.14} parent=1 // pred_fallthru
      _
    %253 = vsyncpa [#allocation3], 1
    %254 = vsyncpa [#allocation6], 1
    %255 = vsyncpa [#allocation9], 1
    %256 = vsyncpa [#allocation12], 1
    %257 = vsyncpa [#allocation4], 1

// kernel: bert_classifier_forward.11
$region0: #{bert_classifier_forward.11}
  #allocation0 [shape = 'u32[]', space=smem, size = 0x4, offset = 0x4, fixed_abs, tag = 'smem constant byte address 0x4 - core index']
  #allocation1 [shape = 'u32[144,128]{1,0:T(1,128)}', space=vmem, size = 0x12000, scoped, tag = 'internal scratch']
  %s0 = inlined_call_operand.hbm [shape: f32[16,32], index: 0, kind: input, shape index: {}]
  %s1 = inlined_call_operand.hbm [shape: f32[1,32], index: 1, kind: input, shape index: {}]
  %s2 = inlined_call_operand.hbm [shape: f32[1,32], index: 2, kind: input, shape index: {}]
  %s3 = inlined_call_operand.hbm [shape: bf16[16,32], index: 3, kind: output, shape index: {}]
  %s4 = sld [smem:[#allocation0]]
  $region34: #{bert_classifier_forward.11} parent=0
    _
  %s6 = ssub.s32 1, %s4
  %s7 = scalar_select 0, %s6, %s4
  $region1: #{bert_classifier_forward.11} parent=0
    #allocation2 [shape = 'u8[8192]{0}', space=vmem, size = 0x2000, scoped, tag = 'input window, operand 0, single buffered']
    #allocation3 [shape = 's32[1]{0}', space=sflag, size = 0x4, scoped, tag = 'scoped memory for bert_classifier_forward.11']
    #allocation4 [shape = 's32[1]{0}', space=sflag, size = 0x4, scoped, tag = 'scoped memory for bert_classifier_forward.11']
    #allocation5 [shape = 'u8[512]{0}', space=vmem, size = 0x400, scoped, tag = 'input window, operand 1, single buffered']
    #allocation6 [shape = 's32[1]{0}', space=sflag, size = 0x4, scoped, tag = 'scoped memory for bert_classifier_forward.11']
    #allocation7 [shape = 'u8[512]{0}', space=vmem, size = 0x400, scoped, tag = 'input window, operand 2, single buffered']
    #allocation8 [shape = 'u8[4096]{0}', space=vmem, size = 0x1000, scoped, tag = 'output window, operand 0, single buffered']
    %8 = vsyncpa [#allocation3], 0
    %9 = vsyncpa [#allocation6], 0
    %10 = vsyncpa [#allocation4], 0
    // Predicated region
    $region2: #{bert_classifier_forward.11} parent=1 // pred_check
      _
    $region3: #{bert_classifier_forward.11} parent=1 // pred_check_branch
      %12 = sbr.rel (0) target = $region5
    $region4: #{bert_classifier_forward.11} parent=1 // pred_region
      %s14 = ssub.s32 256, 256
      %15 = vsyncadd [#allocation3], %s14
      %s16 = sshll.u32 [#allocation2], 4
      %s17 = int_to_ptr.vmem [resolvable:$true] %s16
      %22 = dma.hbm_to_vmem [thread:$0]  %s0, 256, %s17, [#allocation3], 128, 128, 8
    $region5: #{bert_classifier_forward.11} parent=1 // pred_fallthru
      _
    // Predicated region
    $region6: #{bert_classifier_forward.11} parent=1 // pred_check
      _
    $region7: #{bert_classifier_forward.11} parent=1 // pred_check_branch
      %24 = sbr.rel (0) target = $region9
    $region8: #{bert_classifier_forward.11} parent=1 // pred_region
      %s26 = ssub.s32 16, 16
      %27 = vsyncadd [#allocation6], %s26
      %s29 = sshll.u32 [#allocation5], 4
      %s30 = int_to_ptr.vmem [resolvable:$true] %s29
      %32 = dma.hbm_to_vmem [thread:$0]  %s1, 16, %s30, [#allocation6]
    $region9: #{bert_classifier_forward.11} parent=1 // pred_fallthru
      _
    // Predicated region
    $region10: #{bert_classifier_forward.11} parent=1 // pred_check
      _
    $region11: #{bert_classifier_forward.11} parent=1 // pred_check_branch
      %34 = sbr.rel (0) target = $region13
    $region12: #{bert_classifier_forward.11} parent=1 // pred_region
      %s36 = ssub.s32 16, 16
      %37 = vsyncadd [#allocation6], %s36
      %s39 = sshll.u32 [#allocation7], 4
      %s40 = int_to_ptr.vmem [resolvable:$true] %s39
      %42 = dma.hbm_to_vmem [thread:$0]  %s2, 16, %s40, [#allocation6]
    $region13: #{bert_classifier_forward.11} parent=1 // pred_fallthru
      _
    // Predicated region
    $region14: #{bert_classifier_forward.11} parent=1 // pred_check
      _
    $region15: #{bert_classifier_forward.11} parent=1 // pred_check_branch
      %44 = sbr.rel (0) target = $region17
    $region16: #{bert_classifier_forward.11} parent=1 // pred_region
      %45 = dma.done [#allocation3], 256
    $region17: #{bert_classifier_forward.11} parent=1 // pred_fallthru
      _
    // Predicated region
    $region18: #{bert_classifier_forward.11} parent=1 // pred_check
      _
    $region19: #{bert_classifier_forward.11} parent=1 // pred_check_branch
      %47 = sbr.rel (0) target = $region21
    $region20: #{bert_classifier_forward.11} parent=1 // pred_region
      %48 = dma.done [#allocation6], 16
    $region21: #{bert_classifier_forward.11} parent=1 // pred_fallthru
      _
    // Predicated region
    $region22: #{bert_classifier_forward.11} parent=1 // pred_check
      _
    $region23: #{bert_classifier_forward.11} parent=1 // pred_check_branch
      %50 = sbr.rel (0) target = $region25
    $region24: #{bert_classifier_forward.11} parent=1 // pred_region
      %51 = dma.done [#allocation6], 16
    $region25: #{bert_classifier_forward.11} parent=1 // pred_fallthru
      _
    %v52 = vld [vmem:[#allocation2] sm:$0xff]
    %v53 = vld [vmem:[#allocation2 + $0x8] sm:$0xff]
    %vm54 = vcmask 261120
    %v55 = vsel %vm54, %v52, 0.0
    %56 = vadd.xlane.f32.xlu0 %v55
    %v57 = vpop.xlane.xlu0 %56
    %v58 = vsel %vm54, %v53, 0.0
    %59 = vadd.xlane.f32.xlu0 %v58
    %v60 = vpop.xlane.xlu0 %59
    %v61 = vrcp.pop 32.0
    %v62 = vmul.f32 %v57, %v61
    %v63 = vmul.f32 %v60, %v61
    %v64 = vsub.f32 %v52, %v62
    %v65 = vsub.f32 %v53, %v63
    %v66 = vmul.f32 %v64, %v64
    %v67 = vmul.f32 %v65, %v65
    %v68 = vsel %vm54, %v66, 0.0
    %69 = vadd.xlane.f32.xlu0 %v68
    %v70 = vpop.xlane.xlu0 %69
    %v71 = vsel %vm54, %v67, 0.0
    %72 = vadd.xlane.f32.xlu0 %v71
    %v73 = vpop.xlane.xlu0 %72
    %v74 = vmul.f32 %v70, %v61
    %v75 = vmul.f32 %v73, %v61
    %v76 = vadd.f32 %v74, 1e-12
    %v77 = vadd.f32 %v75, 1e-12
    %v78 = vrsqrt.pop %v76
    %v79 = vrsqrt.pop %v77
    %v80 = vmul.f32 %v64, %v78
    %v81 = vmul.f32 %v65, %v79
    %v82 = vld [vmem:[#allocation5] sm:$0x1]
    %v84 = vlaneseq
    %v85 = vshrl.u32 %v84, 7
    %v86 = vsub.s32 0, %v85
    %v87 = vrot.slane %v82, %v86
    %v89 = vmul.f32 %v80, %v87
    %v90 = vmul.f32 %v81, %v87
    %v91 = vld [vmem:[#allocation7] sm:$0x1]
    %v93 = vlaneseq
    %v94 = vshrl.u32 %v93, 7
    %v95 = vsub.s32 0, %v94
    %v96 = vrot.slane %v91, %v95
    %v98 = vadd.f32 %v89, %v96
    %v99 = vadd.f32 %v90, %v96
    %v100 = vpack.c.bf16 %v99, %v98
    %v102 = vunpack.c.l.b16 %v100
    %v103 = vunpack.c.h.b16 %v100
    %v104 = vpack.c.b16 %v102, %v102
    %v105 = vpack.c.b16 %v103, %v103
    %vm108 = vcmask 257024
    %109 = vst.msk [vmem:[#allocation8] sm:$0xf] %vm108, %v104
    %110 = vst.msk [vmem:[#allocation8 + $0x4] sm:$0xf] %vm108, %v105
    // Predicated region
    $region26: #{bert_classifier_forward.11} parent=1 // pred_check
      _
    $region27: #{bert_classifier_forward.11} parent=1 // pred_check_branch
      %112 = sbr.rel (0) target = $region29
    $region28: #{bert_classifier_forward.11} parent=1 // pred_region
      %s114 = ssub.s32 128, 128
      %115 = vsyncadd [#allocation4], %s114
      %s116 = sshll.u32 [#allocation8], 4
      %s117 = int_to_ptr.vmem [resolvable:$true] %s116
      %122 = dma.vmem_to_hbm [thread:$0]  %s117, 128, %s3, [#allocation4], 64, 64, 4
    $region29: #{bert_classifier_forward.11} parent=1 // pred_fallthru
      _
    // Predicated region
    $region30: #{bert_classifier_forward.11} parent=1 // pred_check
      _
    $region31: #{bert_classifier_forward.11} parent=1 // pred_check_branch
      %124 = sbr.rel (0) target = $region33
    $region32: #{bert_classifier_forward.11} parent=1 // pred_region
      %125 = dma.done [#allocation4], 128
    $region33: #{bert_classifier_forward.11} parent=1 // pred_fallthru
      _
    %126 = vsyncpa [#allocation3], 1
    %127 = vsyncpa [#allocation6], 1
    %128 = vsyncpa [#allocation4], 1

// kernel: bert_classifier_forward.12
$region0: #{bert_classifier_forward.12}
  #allocation0 [shape = 'u32[]', space=smem, size = 0x4, offset = 0x4, fixed_abs, tag = 'smem constant byte address 0x4 - core index']
  #allocation1 [shape = 'u32[144,128]{1,0:T(1,128)}', space=vmem, size = 0x12000, scoped, tag = 'internal scratch']
  %s0 = inlined_call_operand.hbm [shape: bf16[16,32], index: 0, kind: input, shape index: {}]
  %s1 = inlined_call_operand.hbm [shape: bf16[32,96], index: 1, kind: input, shape index: {}]
  %s2 = inlined_call_operand.hbm [shape: f32[1,96], index: 2, kind: input, shape index: {}]
  %s3 = inlined_call_operand.hbm [shape: bf16[16,32], index: 3, kind: output, shape index: {0}]
  %s4 = inlined_call_operand.hbm [shape: bf16[16,32], index: 4, kind: output, shape index: {1}]
  %s5 = inlined_call_operand.hbm [shape: bf16[16,32], index: 5, kind: output, shape index: {2}]
  %6 = xla_tuple %s3, %s4, %s5
  %s7 = sld [smem:[#allocation0]]
  $region50: #{bert_classifier_forward.12} parent=0
    _
  %s9 = ssub.s32 1, %s7
  %s10 = scalar_select 0, %s9, %s7
  $region1: #{bert_classifier_forward.12} parent=0
    #allocation2 [shape = 'u8[4096]{0}', space=vmem, size = 0x1000, scoped, tag = 'input window, operand 0, single buffered']
    #allocation3 [shape = 's32[1]{0}', space=sflag, size = 0x4, scoped, tag = 'scoped memory for bert_classifier_forward.12']
    #allocation4 [shape = 's32[1]{0}', space=sflag, size = 0x4, scoped, tag = 'scoped memory for bert_classifier_forward.12']
    #allocation5 [shape = 'u8[8192]{0}', space=vmem, size = 0x2000, scoped, tag = 'input window, operand 1, single buffered']
    #allocation6 [shape = 's32[1]{0}', space=sflag, size = 0x4, scoped, tag = 'scoped memory for bert_classifier_forward.12']
    #allocation7 [shape = 'u8[512]{0}', space=vmem, size = 0x400, scoped, tag = 'input window, operand 2, single buffered']
    #allocation8 [shape = 'u8[4096]{0}', space=vmem, size = 0x1000, scoped, tag = 'output window, operand 0, single buffered']
    #allocation9 [shape = 'u8[4096]{0}', space=vmem, size = 0x1000, scoped, tag = 'output window, operand 1, single buffered']
    #allocation10 [shape = 's32[1]{0}', space=sflag, size = 0x4, scoped, tag = 'scoped memory for bert_classifier_forward.12']
    #allocation11 [shape = 'u8[4096]{0}', space=vmem, size = 0x1000, scoped, tag = 'output window, operand 2, single buffered']
    %11 = vsyncpa [#allocation3], 0
    %12 = vsyncpa [#allocation6], 0
    %13 = vsyncpa [#allocation4], 0
    %14 = vsyncpa [#allocation10], 0
    // Predicated region
    $region2: #{bert_classifier_forward.12} parent=1 // pred_check
      _
    $region3: #{bert_classifier_forward.12} parent=1 // pred_check_branch
      %16 = sbr.rel (0) target = $region5
    $region4: #{bert_classifier_forward.12} parent=1 // pred_region
      %s18 = ssub.s32 128, 128
      %19 = vsyncadd [#allocation3], %s18
      %s20 = sshll.u32 [#allocation2], 4
      %s21 = int_to_ptr.vmem [resolvable:$true] %s20
      %26 = dma.hbm_to_vmem [thread:$0]  %s0, 128, %s21, [#allocation3], 64, 64, 4
    $region5: #{bert_classifier_forward.12} parent=1 // pred_fallthru
      _
    // Predicated region
    $region6: #{bert_classifier_forward.12} parent=1 // pred_check
      _
    $region7: #{bert_classifier_forward.12} parent=1 // pred_check_branch
      %28 = sbr.rel (0) target = $region9
    $region8: #{bert_classifier_forward.12} parent=1 // pred_region
      %s30 = ssub.s32 256, 256
      %31 = vsyncadd [#allocation6], %s30
      %s32 = sshll.u32 [#allocation5], 4
      %s33 = int_to_ptr.vmem [resolvable:$true] %s32
      %38 = dma.hbm_to_vmem [thread:$0]  %s1, 256, %s33, [#allocation6], 64, 64, 4
    $region9: #{bert_classifier_forward.12} parent=1 // pred_fallthru
      _
    // Predicated region
    $region10: #{bert_classifier_forward.12} parent=1 // pred_check
      _
    $region11: #{bert_classifier_forward.12} parent=1 // pred_check_branch
      %40 = sbr.rel (0) target = $region13
    $region12: #{bert_classifier_forward.12} parent=1 // pred_region
      %s42 = ssub.s32 16, 16
      %43 = vsyncadd [#allocation6], %s42
      %s45 = sshll.u32 [#allocation7], 4
      %s46 = int_to_ptr.vmem [resolvable:$true] %s45
      %48 = dma.hbm_to_vmem [thread:$0]  %s2, 16, %s46, [#allocation6]
    $region13: #{bert_classifier_forward.12} parent=1 // pred_fallthru
      _
    // Predicated region
    $region14: #{bert_classifier_forward.12} parent=1 // pred_check
      _
    $region15: #{bert_classifier_forward.12} parent=1 // pred_check_branch
      %50 = sbr.rel (0) target = $region17
    $region16: #{bert_classifier_forward.12} parent=1 // pred_region
      %51 = dma.done [#allocation3], 128
    $region17: #{bert_classifier_forward.12} parent=1 // pred_fallthru
      _
    // Predicated region
    $region18: #{bert_classifier_forward.12} parent=1 // pred_check
      _
    $region19: #{bert_classifier_forward.12} parent=1 // pred_check_branch
      %53 = sbr.rel (0) target = $region21
    $region20: #{bert_classifier_forward.12} parent=1 // pred_region
      %54 = dma.done [#allocation6], 256
    $region21: #{bert_classifier_forward.12} parent=1 // pred_fallthru
      _
    // Predicated region
    $region22: #{bert_classifier_forward.12} parent=1 // pred_check
      _
    $region23: #{bert_classifier_forward.12} parent=1 // pred_check_branch
      %56 = sbr.rel (0) target = $region25
    $region24: #{bert_classifier_forward.12} parent=1 // pred_region
      %57 = dma.done [#allocation6], 16
    $region25: #{bert_classifier_forward.12} parent=1 // pred_fallthru
      _
    %v59 = vld [vmem:[#allocation2] sm:$0xf]
    %v60 = vld [vmem:[#allocation2 + $0x4] sm:$0xf]
    %v61 = vld [vmem:[#allocation5] sm:$0xf]
    %v62 = vld [vmem:[#allocation5 + $0x4] sm:$0xf]
    %v63 = vld [vmem:[#allocation5 + $0x8] sm:$0xf]
    %v64 = vld [vmem:[#allocation5 + $0xc] sm:$0xf]
    %v65 = vld [vmem:[#allocation7] sm:$0x1]
    %v67 = vlaneseq
    %v68 = vshrl.u32 %v67, 7
    %v69 = vsub.s32 0, %v68
    %v70 = vrot.slane %v65, %v69
    %v74 = vunpack.c.l.b16 %v59
    %v75 = vunpack.c.l.b16 %v60
    %v76 = vpack.c.b16 %v75, %v74
    %v81 = vunpack.c.l.b16 %v61
    %v82 = vunpack.c.l.b16 %v62
    %v83 = vunpack.c.l.b16 %v63
    %v84 = vunpack.c.l.b16 %v64
    %v85 = vpack.c.b16 %v82, %v81
    %v86 = vpack.c.b16 %v84, %v83
    %vm89 = vcmask 261120
    %v91 = vsel %vm89, %v76, 0
    %93 = vmatprep.subr.bf16.mxu0 0
    %94 = vmatpush1.bf16.msra.mxu0 %v85
    %95 = vmatprep.subr.bf16.mxu0 0
    %96 = vmatpush1.bf16.msra.mxu0 %v86
    %97 = vmatprep.subr.bf16.mxu0 0
    %98 = vmatpush1.bf16.msra.mxu0 0
    %99 = vmatprep.subr.bf16.mxu0 0
    %100 = vmatpush1.bf16.msra.mxu0 0
    %101 = vmatprep.subr.bf16.mxu0 0
    %102 = vmatpush1.bf16.msra.mxu0 0
    %103 = vmatprep.subr.bf16.mxu0 0
    %104 = vmatpush1.bf16.msra.mxu0 0
    %105 = vmatprep.subr.bf16.mxu0 0
    %106 = vmatpush1.bf16.msra.mxu0 0
    %107 = vmatprep.subr.bf16.mxu0 0
    %108 = vmatpush1.bf16.msra.mxu0 0
    %109 = vmatprep.subr.bf16.mxu0 0
    %110 = vmatpush1.bf16.msra.mxu0 0
    %111 = vmatprep.subr.bf16.mxu0 0
    %112 = vmatpush1.bf16.msra.mxu0 0
    %113 = vmatprep.subr.bf16.mxu0 0
    %114 = vmatpush1.bf16.msra.mxu0 0
    %115 = vmatprep.subr.bf16.mxu0 0
    %116 = vmatpush1.bf16.msra.mxu0 0
    %117 = vmatprep.subr.bf16.mxu0 0
    %118 = vmatpush1.bf16.msra.mxu0 0
    %119 = vmatprep.subr.bf16.mxu0 0
    %120 = vmatpush1.bf16.msra.mxu0 0
    %121 = vmatprep.subr.bf16.mxu0 0
    %122 = vmatpush1.bf16.msra.mxu0 0
    %123 = vmatprep.subr.bf16.mxu0 0
    %124 = vmatpush1.bf16.msra.mxu0 0
    %125 = vmatprep.mubr.bf16.mxu0 0
    %126 = vmatmul.mubr.bf16.gmra.mrb[0].mxu0 %v91
    %v127 = vpop.f32.mrb[0].mxu0
    %v128 = vadd.f32 %v70, %v127
    %v129 = vpop.f32.mrb[0].mxu0
    %v130 = vpop.f32.mrb[0].mxu0
    %v131 = vadd.f32 %v70, %v130
    %v132 = vpop.f32.mrb[0].mxu0
    %133 = vdwg.mxu0
    %v134 = vpack.c.bf16 %v131, %v128
    %v136 = vunpack.c.l.b16 %v134
    %v137 = vunpack.c.h.b16 %v134
    %v138 = vpack.c.b16 %v136, %v136
    %v139 = vpack.c.b16 %v137, %v137
    %vm142 = vcmask 257024
    %143 = vst.msk [vmem:[#allocation8] sm:$0xf] %vm142, %v138
    %144 = vst.msk [vmem:[#allocation8 + $0x4] sm:$0xf] %vm142, %v139
    %145 = vrot.lane.b32.xlu0 %v138, 96
    %v146 = vpop.permute.xlu0 %145
    %147 = vrot.lane.b32.xlu0 %v139, 96
    %v148 = vpop.permute.xlu0 %147
    %151 = vst.msk [vmem:[#allocation9] sm:$0xf] %vm142, %v146
    %152 = vst.msk [vmem:[#allocation9 + $0x4] sm:$0xf] %vm142, %v148
    %153 = vrot.lane.b32.xlu0 %v138, 64
    %v154 = vpop.permute.xlu0 %153
    %155 = vrot.lane.b32.xlu0 %v139, 64
    %v156 = vpop.permute.xlu0 %155
    %159 = vst.msk [vmem:[#allocation11] sm:$0xf] %vm142, %v154
    %160 = vst.msk [vmem:[#allocation11 + $0x4] sm:$0xf] %vm142, %v156
    // Predicated region
    $region26: #{bert_classifier_forward.12} parent=1 // pred_check
      _
    $region27: #{bert_classifier_forward.12} parent=1 // pred_check_branch
      %162 = sbr.rel (0) target = $region29
    $region28: #{bert_classifier_forward.12} parent=1 // pred_region
      %s164 = ssub.s32 128, 128
      %165 = vsyncadd [#allocation4], %s164
      %s166 = sshll.u32 [#allocation8], 4
      %s167 = int_to_ptr.vmem [resolvable:$true] %s166
      %172 = dma.vmem_to_hbm [thread:$0]  %s167, 128, %s3, [#allocation4], 64, 64, 4
    $region29: #{bert_classifier_forward.12} parent=1 // pred_fallthru
      _
    // Predicated region
    $region30: #{bert_classifier_forward.12} parent=1 // pred_check
      _
    $region31: #{bert_classifier_forward.12} parent=1 // pred_check_branch
      %174 = sbr.rel (0) target = $region33
    $region32: #{bert_classifier_forward.12} parent=1 // pred_region
      %s176 = ssub.s32 128, 128
      %177 = vsyncadd [#allocation10], %s176
      %s178 = sshll.u32 [#allocation9], 4
      %s179 = int_to_ptr.vmem [resolvable:$true] %s178
      %184 = dma.vmem_to_hbm [thread:$0]  %s179, 128, %s4, [#allocation10], 64, 64, 4
    $region33: #{bert_classifier_forward.12} parent=1 // pred_fallthru
      _
    // Predicated region
    $region34: #{bert_classifier_forward.12} parent=1 // pred_check
      _
    $region35: #{bert_classifier_forward.12} parent=1 // pred_check_branch
      %186 = sbr.rel (0) target = $region37
    $region36: #{bert_classifier_forward.12} parent=1 // pred_region
      %s188 = ssub.s32 128, 128
      %189 = vsyncadd [#allocation10], %s188
      %s190 = sshll.u32 [#allocation11], 4
      %s191 = int_to_ptr.vmem [resolvable:$true] %s190
      %196 = dma.vmem_to_hbm [thread:$0]  %s191, 128, %s5, [#allocation10], 64, 64, 4
    $region37: #{bert_classifier_forward.12} parent=1 // pred_fallthru
      _
    // Predicated region
    $region38: #{bert_classifier_forward.12} parent=1 // pred_check
      _
    $region39: #{bert_classifier_forward.12} parent=1 // pred_check_branch
      %198 = sbr.rel (0) target = $region41
    $region40: #{bert_classifier_forward.12} parent=1 // pred_region
      %199 = dma.done [#allocation4], 128
    $region41: #{bert_classifier_forward.12} parent=1 // pred_fallthru
      _
    // Predicated region
    $region42: #{bert_classifier_forward.12} parent=1 // pred_check
      _
    $region43: #{bert_classifier_forward.12} parent=1 // pred_check_branch
      %201 = sbr.rel (0) target = $region45
    $region44: #{bert_classifier_forward.12} parent=1 // pred_region
      %202 = dma.done [#allocation10], 128
    $region45: #{bert_classifier_forward.12} parent=1 // pred_fallthru
      _
    // Predicated region
    $region46: #{bert_classifier_forward.12} parent=1 // pred_check
      _
    $region47: #{bert_classifier_forward.12} parent=1 // pred_check_branch
      %204 = sbr.rel (0) target = $region49
    $region48: #{bert_classifier_forward.12} parent=1 // pred_region
      %205 = dma.done [#allocation10], 128
    $region49: #{bert_classifier_forward.12} parent=1 // pred_fallthru
      _
    %206 = vsyncpa [#allocation3], 1
    %207 = vsyncpa [#allocation6], 1
    %208 = vsyncpa [#allocation4], 1
    %209 = vsyncpa [#allocation10], 1

// kernel: bert_classifier_forward.13
$region0: #{bert_classifier_forward.13}
  #allocation0 [shape = 'u32[]', space=smem, size = 0x4, offset = 0x4, fixed_abs, tag = 'smem constant byte address 0x4 - core index']
  #allocation1 [shape = 'u32[144,128]{1,0:T(1,128)}', space=vmem, size = 0x12000, scoped, tag = 'internal scratch']
  %s0 = inlined_call_operand.hbm [shape: bf16[16,32], index: 0, kind: input, shape index: {}]
  %s1 = inlined_call_operand.hbm [shape: bf16[16,32], index: 1, kind: input, shape index: {}]
  %s2 = inlined_call_operand.hbm [shape: bf16[16,32], index: 2, kind: input, shape index: {}]
  %s3 = inlined_call_operand.hbm [shape: f32[2,1,8], index: 3, kind: input, shape index: {}]
  %s4 = inlined_call_operand.hbm [shape: bf16[16,32], index: 4, kind: output, shape index: {}]
  %s5 = sld [smem:[#allocation0]]
  $region65: #{bert_classifier_forward.13} parent=0
    _
  %s7 = ssub.s32 1, %s5
  %s8 = scalar_select 0, %s7, %s5
  $region1: #{bert_classifier_forward.13} parent=0
    #allocation2 [shape = 'u8[4096]{0}', space=vmem, size = 0x1000, scoped, tag = 'input window, operand 0']
    #allocation3 [shape = 's32[2]{0}', space=sflag, size = 0x8, scoped, tag = 'scoped memory for bert_classifier_forward.13']
    #allocation4 [shape = 's32[2]{0}', space=sflag, size = 0x8, scoped, tag = 'scoped memory for bert_classifier_forward.13']
    #allocation5 [shape = 'u8[4096]{0}', space=vmem, size = 0x1000, scoped, tag = 'input window, operand 1']
    #allocation6 [shape = 's32[2]{0}', space=sflag, size = 0x8, scoped, tag = 'scoped memory for bert_classifier_forward.13']
    #allocation7 [shape = 'u8[4096]{0}', space=vmem, size = 0x1000, scoped, tag = 'input window, operand 2']
    #allocation8 [shape = 'u8[1024]{0}', space=vmem, size = 0x400, scoped, tag = 'input window, operand 3']
    #allocation9 [shape = 's32[2]{0}', space=sflag, size = 0x8, scoped, tag = 'scoped memory for bert_classifier_forward.13']
    #allocation10 [shape = 'u8[4096]{0}', space=vmem, size = 0x1000, scoped, tag = 'output window, operand 0']
    %9 = vsyncpa [#allocation3], 0
    %s10 = scalar_lea.sflag [#allocation3], 1
    %11 = vsyncpa %s10, 0
    %12 = vsyncpa [#allocation6], 0
    %s13 = scalar_lea.sflag [#allocation6], 1
    %14 = vsyncpa %s13, 0
    %15 = vsyncpa [#allocation9], 0
    %s16 = scalar_lea.sflag [#allocation9], 1
    %17 = vsyncpa %s16, 0
    %18 = vsyncpa [#allocation4], 0
    %s19 = scalar_lea.sflag [#allocation4], 1
    %20 = vsyncpa %s19, 0
    loop: start=0, step=1, limit=4
    $region2: #{bert_classifier_forward.13} parent=1 // loop_pre_header
      _
    $region3: #{bert_classifier_forward.13} parent=1 // loop_header
      %s22 = sphi 0, %s26
      %p23 = scmp.ge.s32.totalorder %s22, 4
      %s29 = sphi 0, %s41
      %s30 = sphi 0, %s37
      %s31 = sphi 0, %s29
      %s32 = sphi 0, %s30
      %s33 = sphi 0, %s31
      %s34 = sphi 0, %s32
      %s46 = sphi 0, %s48
      %s49 = sphi 0, %s46
      %s50 = sphi 0, %s49
      %s66 = sphi 0, %s50
      %s74 = sphi 0, %s76
      %s77 = sphi 0, %s74
      %s78 = sphi 0, %s77
      %s94 = sphi 0, %s78
      %s102 = sphi 0, %s104
      %s105 = sphi 0, %s102
      %s106 = sphi 0, %s105
      %s122 = sphi 0, %s106
      %s128 = sphi 0, %s130
      %s131 = sphi 0, %s128
      %s132 = sphi 0, %s131
      %s148 = sphi 0, %s132
      %s156 = sphi 0, %s158
      %s159 = sphi 0, %s156
      %s160 = sphi 0, %s159
      %s176 = sphi 0, %s160
    $region4: #{bert_classifier_forward.13} parent=1 // loop_header_branch
      %25 = sbr.rel (%p23) target = $region8
    $region5: #{bert_classifier_forward.13} parent=1 // loop_body
      %s27 = ssub.s32 %s22, 1
      %s28 = ssub.s32 %s22, 2
      %s35 = sadd.s32 1, %s30
      %p36 = scmp.ge.s32.totalorder %s35, 1
      %s37 = scalar_select %p36, 0, %s35
      %s38 = sadd.s32 1, %s29
      %s39 = scalar_select %p36, %s38, %s29
      %p40 = scmp.ge.s32.totalorder %s39, 2
      %s41 = scalar_select %p40, 0, %s39
      %s42 = ssub.s32 %s29, %s41
      %s43 = ssub.s32 %s30, %s37
      %s44 = sor.u32 %s42, %s43
      %p45 = scmp.eq.s32.totalorder %s44, 0
      %s47 = sadd.s32 %s46, 1
      %s48 = scalar_select %p45, %s46, %s47
      %p51 = pneg %p45
      %p52 = scmp.eq.s32.totalorder %s22, 1
      %p53 = por %p51, %p52
      %p54 = scmp.ne.s32.totalorder %s46, %s49
      %p55 = scmp.eq.s32.totalorder %s22, 0
      %p56 = por %p54, %p55
      %p57 = scmp.ne.s32.totalorder %s46, %s49
      %p58 = scmp.eq.s32.totalorder %s27, 1
      %p59 = por %p57, %p58
      %p60 = scmp.ne.s32.totalorder %s49, %s50
      %p61 = scmp.eq.s32.totalorder %s27, 0
      %p62 = por %p60, %p61
      %p63 = scmp.ne.s32.totalorder %s49, %s50
      %p64 = scmp.eq.s32.totalorder %s28, 1
      %p65 = por %p63, %p64
      %p67 = scmp.ne.s32.totalorder %s50, %s66
      %p68 = scmp.eq.s32.totalorder %s28, 0
      %p69 = por %p67, %p68
      %s70 = ssub.s32 %s29, %s41
      %s71 = ssub.s32 %s30, %s37
      %s72 = sor.u32 %s70, %s71
      %p73 = scmp.eq.s32.totalorder %s72, 0
      %s75 = sadd.s32 %s74, 1
      %s76 = scalar_select %p73, %s74, %s75
      %p79 = pneg %p73
      %p80 = scmp.eq.s32.totalorder %s22, 1
      %p81 = por %p79, %p80
      %p82 = scmp.ne.s32.totalorder %s74, %s77
      %p83 = scmp.eq.s32.totalorder %s22, 0
      %p84 = por %p82, %p83
      %p85 = scmp.ne.s32.totalorder %s74, %s77
      %p86 = scmp.eq.s32.totalorder %s27, 1
      %p87 = por %p85, %p86
      %p88 = scmp.ne.s32.totalorder %s77, %s78
      %p89 = scmp.eq.s32.totalorder %s27, 0
      %p90 = por %p88, %p89
      %p91 = scmp.ne.s32.totalorder %s77, %s78
      %p92 = scmp.eq.s32.totalorder %s28, 1
      %p93 = por %p91, %p92
      %p95 = scmp.ne.s32.totalorder %s78, %s94
      %p96 = scmp.eq.s32.totalorder %s28, 0
      %p97 = por %p95, %p96
      %s98 = ssub.s32 %s29, %s41
      %s99 = ssub.s32 %s30, %s37
      %s100 = sor.u32 %s98, %s99
      %p101 = scmp.eq.s32.totalorder %s100, 0
      %s103 = sadd.s32 %s102, 1
      %s104 = scalar_select %p101, %s102, %s103
      %p107 = pneg %p101
      %p108 = scmp.eq.s32.totalorder %s22, 1
      %p109 = por %p107, %p108
      %p110 = scmp.ne.s32.totalorder %s102, %s105
      %p111 = scmp.eq.s32.totalorder %s22, 0
      %p112 = por %p110, %p111
      %p113 = scmp.ne.s32.totalorder %s102, %s105
      %p114 = scmp.eq.s32.totalorder %s27, 1
      %p115 = por %p113, %p114
      %p116 = scmp.ne.s32.totalorder %s105, %s106
      %p117 = scmp.eq.s32.totalorder %s27, 0
      %p118 = por %p116, %p117
      %p119 = scmp.ne.s32.totalorder %s105, %s106
      %p120 = scmp.eq.s32.totalorder %s28, 1
      %p121 = por %p119, %p120
      %p123 = scmp.ne.s32.totalorder %s106, %s122
      %p124 = scmp.eq.s32.totalorder %s28, 0
      %p125 = por %p123, %p124
      %s126 = ssub.s32 %s29, %s41
      %p127 = scmp.eq.s32.totalorder %s126, 0
      %s129 = sadd.s32 %s128, 1
      %s130 = scalar_select %p127, %s128, %s129
      %p133 = pneg %p127
      %p134 = scmp.eq.s32.totalorder %s22, 1
      %p135 = por %p133, %p134
      %p136 = scmp.ne.s32.totalorder %s128, %s131
      %p137 = scmp.eq.s32.totalorder %s22, 0
      %p138 = por %p136, %p137
      %p139 = scmp.ne.s32.totalorder %s128, %s131
      %p140 = scmp.eq.s32.totalorder %s27, 1
      %p141 = por %p139, %p140
      %p142 = scmp.ne.s32.totalorder %s131, %s132
      %p143 = scmp.eq.s32.totalorder %s27, 0
      %p144 = por %p142, %p143
      %p145 = scmp.ne.s32.totalorder %s131, %s132
      %p146 = scmp.eq.s32.totalorder %s28, 1
      %p147 = por %p145, %p146
      %p149 = scmp.ne.s32.totalorder %s132, %s148
      %p150 = scmp.eq.s32.totalorder %s28, 0
      %p151 = por %p149, %p150
      %s152 = ssub.s32 %s29, %s41
      %s153 = ssub.s32 %s30, %s37
      %s154 = sor.u32 %s152, %s153
      %p155 = scmp.eq.s32.totalorder %s154, 0
      %s157 = sadd.s32 %s156, 1
      %s158 = scalar_select %p155, %s156, %s157
      %p161 = pneg %p155
      %p162 = scmp.eq.s32.totalorder %s22, 1
      %p163 = por %p161, %p162
      %p164 = scmp.ne.s32.totalorder %s156, %s159
      %p165 = scmp.eq.s32.totalorder %s22, 0
      %p166 = por %p164, %p165
      %p167 = scmp.ne.s32.totalorder %s156, %s159
      %p168 = scmp.eq.s32.totalorder %s27, 1
      %p169 = por %p167, %p168
      %p170 = scmp.ne.s32.totalorder %s159, %s160
      %p171 = scmp.eq.s32.totalorder %s27, 0
      %p172 = por %p170, %p171
      %p173 = scmp.ne.s32.totalorder %s159, %s160
      %p174 = scmp.eq.s32.totalorder %s28, 1
      %p175 = por %p173, %p174
      %p177 = scmp.ne.s32.totalorder %s160, %s176
      %p178 = scmp.eq.s32.totalorder %s28, 0
      %p179 = por %p177, %p178
      %p180 = scmp.le.s32.totalorder 1, %s22
      %p181 = scmp.lt.s32.totalorder %s22, 3
      %p182 = pnand %p180, %p181
      %p183 = pneg %p182
      // Predicated region
      $region9: #{bert_classifier_forward.13} parent=5 // pred_check
        _
      $region10: #{bert_classifier_forward.13} parent=5 // pred_check_branch
        %185 = sbr.rel (%p182) target = $region12
      $region11: #{bert_classifier_forward.13} parent=5 // pred_region
        %s186 = ssub.s32 %s22, 1
      $region12: #{bert_classifier_forward.13} parent=5 // pred_fallthru
        _
      %p187 = scmp.lt.s32.totalorder %s22, 2
      // Predicated region
      $region13: #{bert_classifier_forward.13} parent=5 // pred_check
        %p188 = pneg %p187
      $region14: #{bert_classifier_forward.13} parent=5 // pred_check_branch
        %190 = sbr.rel (%p188) target = $region16
      $region15: #{bert_classifier_forward.13} parent=5 // pred_region
        // Predicated region
        $region17: #{bert_classifier_forward.13} parent=15 // pred_check
          %p191 = pneg %p56
        $region18: #{bert_classifier_forward.13} parent=15 // pred_check_branch
          %193 = sbr.rel (%p191) target = $region20
        $region19: #{bert_classifier_forward.13} parent=15 // pred_region
          %s194 = sand.u32 %s46, 1
          %s195 = scalar_lea.sflag [#allocation3], %s194
          %s196 = sand.u32 %s46, 1
          %s197 = smul.addr %s196, 4
          %s198 = scalar_lea.vmem [#allocation2], %s197
          %s200 = ssub.s32 64, 64
          %201 = vsyncadd %s195, %s200
          %s202 = sadd.s32 %s30, %s29
          %s203 = smul.addr %s202, 64
          %s204 = scalar_lea.hbm %s0, %s203
          %s206 = sshll.u32 %s198, 4
          %s207 = int_to_ptr.vmem [resolvable:$true] %s206
          %209 = dma.hbm_to_vmem [thread:$0]  %s204, 64, %s207, %s195
        $region20: #{bert_classifier_forward.13} parent=15 // pred_fallthru
          _
        // Predicated region
        $region21: #{bert_classifier_forward.13} parent=15 // pred_check
          %p210 = pneg %p84
        $region22: #{bert_classifier_forward.13} parent=15 // pred_check_branch
          %212 = sbr.rel (%p210) target = $region24
        $region23: #{bert_classifier_forward.13} parent=15 // pred_region
          %s213 = sand.u32 %s22, 1
          %s214 = scalar_lea.sflag [#allocation6], %s213
          %s215 = sand.u32 %s74, 1
          %s216 = smul.addr %s215, 4
          %s217 = scalar_lea.vmem [#allocation5], %s216
          %s219 = ssub.s32 64, 64
          %220 = vsyncadd %s214, %s219
          %s221 = sadd.s32 %s30, %s29
          %s222 = smul.addr %s221, 64
          %s223 = scalar_lea.hbm %s1, %s222
          %s225 = sshll.u32 %s217, 4
          %s226 = int_to_ptr.vmem [resolvable:$true] %s225
          %228 = dma.hbm_to_vmem [thread:$0]  %s223, 64, %s226, %s214
        $region24: #{bert_classifier_forward.13} parent=15 // pred_fallthru
          _
        // Predicated region
        $region25: #{bert_classifier_forward.13} parent=15 // pred_check
          %p229 = pneg %p112
        $region26: #{bert_classifier_forward.13} parent=15 // pred_check_branch
          %231 = sbr.rel (%p229) target = $region28
        $region27: #{bert_classifier_forward.13} parent=15 // pred_region
          %s232 = sand.u32 %s22, 1
          %s233 = scalar_lea.sflag [#allocation6], %s232
          %s234 = sand.u32 %s102, 1
          %s235 = smul.addr %s234, 4
          %s236 = scalar_lea.vmem [#allocation7], %s235
          %s238 = ssub.s32 64, 64
          %239 = vsyncadd %s233, %s238
          %s240 = sadd.s32 %s30, %s29
          %s241 = smul.addr %s240, 64
          %s242 = scalar_lea.hbm %s2, %s241
          %s244 = sshll.u32 %s236, 4
          %s245 = int_to_ptr.vmem [resolvable:$true] %s244
          %247 = dma.hbm_to_vmem [thread:$0]  %s242, 64, %s245, %s233
        $region28: #{bert_classifier_forward.13} parent=15 // pred_fallthru
          _
        // Predicated region
        $region29: #{bert_classifier_forward.13} parent=15 // pred_check
          %p248 = pneg %p138
        $region30: #{bert_classifier_forward.13} parent=15 // pred_check_branch
          %250 = sbr.rel (%p248) target = $region32
        $region31: #{bert_classifier_forward.13} parent=15 // pred_region
          %s251 = sand.u32 %s128, 1
          %s252 = scalar_lea.sflag [#allocation9], %s251
          %s253 = sand.u32 %s128, 1
          %s254 = scalar_lea.vmem [#allocation8], %s253
          %s256 = ssub.s32 16, 16
          %257 = vsyncadd %s252, %s256
          %s258 = smul.addr %s29, 16
          %s259 = scalar_lea.hbm %s3, %s258
          %s261 = sshll.u32 %s254, 4
          %s262 = int_to_ptr.vmem [resolvable:$true] %s261
          %264 = dma.hbm_to_vmem [thread:$0]  %s259, 16, %s262, %s252
        $region32: #{bert_classifier_forward.13} parent=15 // pred_fallthru
          _
      $region16: #{bert_classifier_forward.13} parent=5 // pred_fallthru
        _
      %p265 = scmp.le.s32.totalorder 1, %s22
      %p266 = scmp.lt.s32.totalorder %s22, 3
      %p267 = pnand %p265, %p266
      %p268 = pneg %p267
      // Predicated region
      $region33: #{bert_classifier_forward.13} parent=5 // pred_check
        _
      $region34: #{bert_classifier_forward.13} parent=5 // pred_check_branch
        %270 = sbr.rel (%p267) target = $region36
      $region35: #{bert_classifier_forward.13} parent=5 // pred_region
        %s271 = ssub.s32 %s22, 1
        %s272 = sand.u32 %s49, 1
        %s273 = scalar_lea.sflag [#allocation3], %s272
        %s274 = sand.u32 %s49, 1
        %s275 = smul.addr %s274, 4
        %s276 = scalar_lea.vmem [#allocation2], %s275
        // Predicated region
        $region37: #{bert_classifier_forward.13} parent=35 // pred_check
          %p277 = pneg %p62
        $region38: #{bert_classifier_forward.13} parent=35 // pred_check_branch
          %279 = sbr.rel (%p277) target = $region40
        $region39: #{bert_classifier_forward.13} parent=35 // pred_region
          %280 = dma.done %s273, 64
        $region40: #{bert_classifier_forward.13} parent=35 // pred_fallthru
          _
        %s281 = sand.u32 %s27, 1
        %s282 = scalar_lea.sflag [#allocation6], %s281
        %s283 = sand.u32 %s77, 1
        %s284 = smul.addr %s283, 4
        %s285 = scalar_lea.vmem [#allocation5], %s284
        // Predicated region
        $region41: #{bert_classifier_forward.13} parent=35 // pred_check
          %p286 = pneg %p90
        $region42: #{bert_classifier_forward.13} parent=35 // pred_check_branch
          %288 = sbr.rel (%p286) target = $region44
        $region43: #{bert_classifier_forward.13} parent=35 // pred_region
          %289 = dma.done %s282, 64
        $region44: #{bert_classifier_forward.13} parent=35 // pred_fallthru
          _
        %s290 = sand.u32 %s27, 1
        %s291 = scalar_lea.sflag [#allocation6], %s290
        %s292 = sand.u32 %s105, 1
        %s293 = smul.addr %s292, 4
        %s294 = scalar_lea.vmem [#allocation7], %s293
        // Predicated region
        $region45: #{bert_classifier_forward.13} parent=35 // pred_check
          %p295 = pneg %p118
        $region46: #{bert_classifier_forward.13} parent=35 // pred_check_branch
          %297 = sbr.rel (%p295) target = $region48
        $region47: #{bert_classifier_forward.13} parent=35 // pred_region
          %298 = dma.done %s291, 64
        $region48: #{bert_classifier_forward.13} parent=35 // pred_fallthru
          _
        %s299 = sand.u32 %s131, 1
        %s300 = scalar_lea.sflag [#allocation9], %s299
        %s301 = sand.u32 %s131, 1
        %s302 = scalar_lea.vmem [#allocation8], %s301
        // Predicated region
        $region49: #{bert_classifier_forward.13} parent=35 // pred_check
          %p303 = pneg %p144
        $region50: #{bert_classifier_forward.13} parent=35 // pred_check_branch
          %305 = sbr.rel (%p303) target = $region52
        $region51: #{bert_classifier_forward.13} parent=35 // pred_region
          %306 = dma.done %s300, 16
        $region52: #{bert_classifier_forward.13} parent=35 // pred_fallthru
          _
        %s307 = sand.u32 %s49, 1
        %s308 = scalar_lea.sflag [#allocation3], %s307
        %s309 = sand.u32 %s49, 1
        %s310 = smul.addr %s309, 4
        %s311 = scalar_lea.vmem [#allocation2], %s310
        %p312 = pneg %p62
        %p313 = pneg %p59
        %s314 = sand.u32 %s27, 1
        %s315 = scalar_lea.sflag [#allocation6], %s314
        %s316 = sand.u32 %s77, 1
        %s317 = smul.addr %s316, 4
        %s318 = scalar_lea.vmem [#allocation5], %s317
        %p319 = pneg %p90
        %p320 = pneg %p87
        %s321 = sand.u32 %s27, 1
        %s322 = scalar_lea.sflag [#allocation6], %s321
        %s323 = sand.u32 %s105, 1
        %s324 = smul.addr %s323, 4
        %s325 = scalar_lea.vmem [#allocation7], %s324
        %p326 = pneg %p118
        %p327 = pneg %p115
        %s328 = sand.u32 %s131, 1
        %s329 = scalar_lea.sflag [#allocation9], %s328
        %s330 = sand.u32 %s131, 1
        %s331 = scalar_lea.vmem [#allocation8], %s330
        %p332 = pneg %p144
        %p333 = pneg %p141
        %p334 = pneg %p172
        %p335 = pneg %p169
        %s336 = sand.u32 %s159, 1
        %s337 = scalar_lea.sflag [#allocation4], %s336
        %s338 = sand.u32 %s159, 1
        %s339 = smul.addr %s338, 4
        %s340 = scalar_lea.vmem [#allocation10], %s339
        %v342 = vld [vmem:[%s302] sm:$0x1]
        %v343 = vld [vmem:[%s276] sm:$0xf]
        %v344 = vld [vmem:[%s285] sm:$0xf]
        %v345 = vld [vmem:[%s294] sm:$0xf]
        %vm346 = vcmask 130048
        %v348 = vsel %vm346, %v343, 0
        %v351 = vsel %vm346, %v344, 0
        %353 = vmatprep.subr.bf16.mxu0 0
        %354 = vmatpush1.bf16.xpose.msra.mxu0 %v351
        %355 = vmatprep.subr.bf16.mxu0 0
        %356 = vmatpush1.bf16.xpose.msra.mxu0 0
        %357 = vmatprep.subr.bf16.mxu0 0
        %358 = vmatpush1.bf16.xpose.msra.mxu0 0
        %359 = vmatprep.subr.bf16.mxu0 0
        %360 = vmatpush1.bf16.xpose.msra.mxu0 0
        %361 = vmatprep.subr.bf16.mxu0 0
        %362 = vmatpush1.bf16.xpose.msra.mxu0 0
        %363 = vmatprep.subr.bf16.mxu0 0
        %364 = vmatpush1.bf16.xpose.msra.mxu0 0
        %365 = vmatprep.subr.bf16.mxu0 0
        %366 = vmatpush1.bf16.xpose.msra.mxu0 0
        %367 = vmatprep.subr.bf16.mxu0 0
        %368 = vmatpush1.bf16.xpose.msra.mxu0 0
        %369 = vmatprep.subr.bf16.mxu0 0
        %370 = vmatpush1.bf16.xpose.msra.mxu0 0
        %371 = vmatprep.subr.bf16.mxu0 0
        %372 = vmatpush1.bf16.xpose.msra.mxu0 0
        %373 = vmatprep.subr.bf16.mxu0 0
        %374 = vmatpush1.bf16.xpose.msra.mxu0 0
        %375 = vmatprep.subr.bf16.mxu0 0
        %376 = vmatpush1.bf16.xpose.msra.mxu0 0
        %377 = vmatprep.subr.bf16.mxu0 0
        %378 = vmatpush1.bf16.xpose.msra.mxu0 0
        %379 = vmatprep.subr.bf16.mxu0 0
        %380 = vmatpush1.bf16.xpose.msra.mxu0 0
        %381 = vmatprep.subr.bf16.mxu0 0
        %382 = vmatpush1.bf16.xpose.msra.mxu0 0
        %383 = vmatprep.subr.bf16.mxu0 0
        %384 = vmatpush1.bf16.xpose.msra.mxu0 0
        %385 = vmatprep.mubr.bf16.mxu0 0
        %386 = vmatmul.mubr.bf16.gmra.mrb[0].mxu0 %v348
        %v387 = vpop.f32.mrb[0].mxu0
        %v388 = vadd.f32 0.0, %v387
        %v389 = vpop.f32.mrb[0].mxu0
        %v390 = vpop.f32.mrb[0].mxu0
        %v391 = vpop.f32.mrb[0].mxu0
        %392 = vdwg.mxu0
        %v393 = vmul.f32 %v388, 0.25
        %v395 = vlaneseq
        %v396 = vshrl.u32 %v395, 7
        %v397 = vsub.s32 0, %v396
        %v398 = vrot.slane %v342, %v397
        %v400 = vadd.f32 %v393, %v398
        %vm401 = vcmask 64512
        %v402 = vsel %vm401, %v400, -inf
        %403 = vmax.xlane.f32.xlu0 %v402
        %v404 = vpop.xlane.xlu0 %403
        %v405 = vsub.f32 %v400, %v404
        %v406 = vmul.f32 %v405, 1.442695
        %v407 = vpow.pop %v406
        %v408 = vsel %vm401, %v407, 0.0
        %409 = vadd.xlane.f32.xlu0 %v408
        %v410 = vpop.xlane.xlu0 %409
        %v411 = vrcp.pop %v410
        %v412 = vmul.f32 %v407, %v411
        %v413 = vpack.c.bf16 %v412, %v412
        %v415 = vsel %vm401, %v413, 0
        %vm417 = vcmask 1043456
        %v419 = vsel %vm417, %v345, 0
        %421 = vmatprep.subr.bf16.mxu0 0
        %422 = vmatpush1.bf16.msra.mxu0 %v419
        %423 = vmatprep.subr.bf16.mxu0 0
        %424 = vmatpush1.bf16.msra.mxu0 0
        %425 = vmatprep.subr.bf16.mxu0 0
        %426 = vmatpush1.bf16.msra.mxu0 0
        %427 = vmatprep.subr.bf16.mxu0 0
        %428 = vmatpush1.bf16.msra.mxu0 0
        %429 = vmatprep.subr.bf16.mxu0 0
        %430 = vmatpush1.bf16.msra.mxu0 0
        %431 = vmatprep.subr.bf16.mxu0 0
        %432 = vmatpush1.bf16.msra.mxu0 0
        %433 = vmatprep.subr.bf16.mxu0 0
        %434 = vmatpush1.bf16.msra.mxu0 0
        %435 = vmatprep.subr.bf16.mxu0 0
        %436 = vmatpush1.bf16.msra.mxu0 0
        %437 = vmatprep.subr.bf16.mxu0 0
        %438 = vmatpush1.bf16.msra.mxu0 0
        %439 = vmatprep.subr.bf16.mxu0 0
        %440 = vmatpush1.bf16.msra.mxu0 0
        %441 = vmatprep.subr.bf16.mxu0 0
        %442 = vmatpush1.bf16.msra.mxu0 0
        %443 = vmatprep.subr.bf16.mxu0 0
        %444 = vmatpush1.bf16.msra.mxu0 0
        %445 = vmatprep.subr.bf16.mxu0 0
        %446 = vmatpush1.bf16.msra.mxu0 0
        %447 = vmatprep.subr.bf16.mxu0 0
        %448 = vmatpush1.bf16.msra.mxu0 0
        %449 = vmatprep.subr.bf16.mxu0 0
        %450 = vmatpush1.bf16.msra.mxu0 0
        %451 = vmatprep.subr.bf16.mxu0 0
        %452 = vmatpush1.bf16.msra.mxu0 0
        %453 = vmatprep.mubr.bf16.mxu0 0
        %454 = vmatmul.mubr.bf16.gmra.mrb[0].mxu0 %v415
        %v455 = vpop.f32.mrb[0].mxu0
        %v456 = vadd.f32 0.0, %v455
        %v457 = vpop.f32.mrb[0].mxu0
        %v458 = vpop.f32.mrb[0].mxu0
        %v459 = vpop.f32.mrb[0].mxu0
        %460 = vdwg.mxu0
        %v462 = vunpack.c.l.b16 %v343
        %v463 = vpack.c.b16 %v462, %v462
        %464 = vrot.lane.b32.xlu0 %v463, 112
        %v465 = vpop.permute.xlu0 %464
        %v467 = vunpack.c.l.b16 %v344
        %v468 = vpack.c.b16 %v467, %v467
        %469 = vrot.lane.b32.xlu0 %v468, 112
        %v470 = vpop.permute.xlu0 %469
        %v472 = vsel %vm346, %v465, 0
        %v475 = vsel %vm346, %v470, 0
        %477 = vmatprep.subr.bf16.mxu0 0
        %478 = vmatpush1.bf16.xpose.msra.mxu0 %v475
        %479 = vmatprep.subr.bf16.mxu0 0
        %480 = vmatpush1.bf16.xpose.msra.mxu0 0
        %481 = vmatprep.subr.bf16.mxu0 0
        %482 = vmatpush1.bf16.xpose.msra.mxu0 0
        %483 = vmatprep.subr.bf16.mxu0 0
        %484 = vmatpush1.bf16.xpose.msra.mxu0 0
        %485 = vmatprep.subr.bf16.mxu0 0
        %486 = vmatpush1.bf16.xpose.msra.mxu0 0
        %487 = vmatprep.subr.bf16.mxu0 0
        %488 = vmatpush1.bf16.xpose.msra.mxu0 0
        %489 = vmatprep.subr.bf16.mxu0 0
        %490 = vmatpush1.bf16.xpose.msra.mxu0 0
        %491 = vmatprep.subr.bf16.mxu0 0
        %492 = vmatpush1.bf16.xpose.msra.mxu0 0
        %493 = vmatprep.subr.bf16.mxu0 0
        %494 = vmatpush1.bf16.xpose.msra.mxu0 0
        %495 = vmatprep.subr.bf16.mxu0 0
        %496 = vmatpush1.bf16.xpose.msra.mxu0 0
        %497 = vmatprep.subr.bf16.mxu0 0
        %498 = vmatpush1.bf16.xpose.msra.mxu0 0
        %499 = vmatprep.subr.bf16.mxu0 0
        %500 = vmatpush1.bf16.xpose.msra.mxu0 0
        %501 = vmatprep.subr.bf16.mxu0 0
        %502 = vmatpush1.bf16.xpose.msra.mxu0 0
        %503 = vmatprep.subr.bf16.mxu0 0
        %504 = vmatpush1.bf16.xpose.msra.mxu0 0
        %505 = vmatprep.subr.bf16.mxu0 0
        %506 = vmatpush1.bf16.xpose.msra.mxu0 0
        %507 = vmatprep.subr.bf16.mxu0 0
        %508 = vmatpush1.bf16.xpose.msra.mxu0 0
        %509 = vmatprep.mubr.bf16.mxu0 0
        %510 = vmatmul.mubr.bf16.gmra.mrb[0].mxu0 %v472
        %v511 = vpop.f32.mrb[0].mxu0
        %v512 = vadd.f32 0.0, %v511
        %v513 = vpop.f32.mrb[0].mxu0
        %v514 = vpop.f32.mrb[0].mxu0
        %v515 = vpop.f32.mrb[0].mxu0
        %516 = vdwg.mxu0
        %v517 = vmul.f32 %v512, 0.25
        %v518 = vadd.f32 %v517, %v398
        %v519 = vsel %vm401, %v518, -inf
        %520 = vmax.xlane.f32.xlu0 %v519
        %v521 = vpop.xlane.xlu0 %520
        %v522 = vsub.f32 %v518, %v521
        %v523 = vmul.f32 %v522, 1.442695
        %v524 = vpow.pop %v523
        %v525 = vsel %vm401, %v524, 0.0
        %526 = vadd.xlane.f32.xlu0 %v525
        %v527 = vpop.xlane.xlu0 %526
        %v528 = vrcp.pop %v527
        %v529 = vmul.f32 %v524, %v528
        %v530 = vpack.c.bf16 %v529, %v529
        %v532 = vunpack.c.l.b16 %v345
        %v533 = vpack.c.b16 %v532, %v532
        %534 = vrot.lane.b32.xlu0 %v533, 112
        %v535 = vpop.permute.xlu0 %534
        %v537 = vsel %vm401, %v530, 0
        %v540 = vsel %vm417, %v535, 0
        %542 = vmatprep.subr.bf16.mxu0 0
        %543 = vmatpush1.bf16.msra.mxu0 %v540
        %544 = vmatprep.subr.bf16.mxu0 0
        %545 = vmatpush1.bf16.msra.mxu0 0
        %546 = vmatprep.subr.bf16.mxu0 0
        %547 = vmatpush1.bf16.msra.mxu0 0
        %548 = vmatprep.subr.bf16.mxu0 0
        %549 = vmatpush1.bf16.msra.mxu0 0
        %550 = vmatprep.subr.bf16.mxu0 0
        %551 = vmatpush1.bf16.msra.mxu0 0
        %552 = vmatprep.subr.bf16.mxu0 0
        %553 = vmatpush1.bf16.msra.mxu0 0
        %554 = vmatprep.subr.bf16.mxu0 0
        %555 = vmatpush1.bf16.msra.mxu0 0
        %556 = vmatprep.subr.bf16.mxu0 0
        %557 = vmatpush1.bf16.msra.mxu0 0
        %558 = vmatprep.subr.bf16.mxu0 0
        %559 = vmatpush1.bf16.msra.mxu0 0
        %560 = vmatprep.subr.bf16.mxu0 0
        %561 = vmatpush1.bf16.msra.mxu0 0
        %562 = vmatprep.subr.bf16.mxu0 0
        %563 = vmatpush1.bf16.msra.mxu0 0
        %564 = vmatprep.subr.bf16.mxu0 0
        %565 = vmatpush1.bf16.msra.mxu0 0
        %566 = vmatprep.subr.bf16.mxu0 0
        %567 = vmatpush1.bf16.msra.mxu0 0
        %568 = vmatprep.subr.bf16.mxu0 0
        %569 = vmatpush1.bf16.msra.mxu0 0
        %570 = vmatprep.subr.bf16.mxu0 0
        %571 = vmatpush1.bf16.msra.mxu0 0
        %572 = vmatprep.subr.bf16.mxu0 0
        %573 = vmatpush1.bf16.msra.mxu0 0
        %574 = vmatprep.mubr.bf16.mxu0 0
        %575 = vmatmul.mubr.bf16.gmra.mrb[0].mxu0 %v537
        %v576 = vpop.f32.mrb[0].mxu0
        %v577 = vadd.f32 0.0, %v576
        %v578 = vpop.f32.mrb[0].mxu0
        %v579 = vpop.f32.mrb[0].mxu0
        %v580 = vpop.f32.mrb[0].mxu0
        %581 = vdwg.mxu0
        %583 = vrot.lane.b32.xlu0 %v577, 16
        %v584 = vpop.permute.xlu0 %583
        %v586 = vsel %vm346, %v456, %v584
        %v587 = vpack.c.bf16 %v586, %v586
        %vm588 = vcmask 257024
        %589 = vst.msk [vmem:[%s340] sm:$0xf] %vm588, %v587
        %s590 = sand.u32 %s159, 1
        %s591 = scalar_lea.sflag [#allocation4], %s590
        %s592 = sand.u32 %s159, 1
        %s593 = smul.addr %s592, 4
        %s594 = scalar_lea.vmem [#allocation10], %s593
        // Predicated region
        $region53: #{bert_classifier_forward.13} parent=35 // pred_check
          %p595 = pneg %p169
        $region54: #{bert_classifier_forward.13} parent=35 // pred_check_branch
          %597 = sbr.rel (%p595) target = $region56
        $region55: #{bert_classifier_forward.13} parent=35 // pred_region
          %s599 = ssub.s32 64, 64
          %600 = vsyncadd %s591, %s599
          %s601 = sadd.s32 %s32, %s31
          %s602 = smul.addr %s601, 64
          %s603 = scalar_lea.hbm %s4, %s602
          %s605 = sshll.u32 %s594, 4
          %s606 = int_to_ptr.vmem [resolvable:$true] %s605
          %608 = dma.vmem_to_hbm [thread:$0]  %s606, 64, %s603, %s591
        $region56: #{bert_classifier_forward.13} parent=35 // pred_fallthru
          _
      $region36: #{bert_classifier_forward.13} parent=5 // pred_fallthru
        _
      %p609 = scmp.le.s32.totalorder 2, %s22
      // Predicated region
      $region57: #{bert_classifier_forward.13} parent=5 // pred_check
        %p610 = pneg %p609
      $region58: #{bert_classifier_forward.13} parent=5 // pred_check_branch
        %612 = sbr.rel (%p610) target = $region60
      $region59: #{bert_classifier_forward.13} parent=5 // pred_region
        %s613 = ssub.s32 %s22, 2
        // Predicated region
        $region61: #{bert_classifier_forward.13} parent=59 // pred_check
          %p614 = pneg %p175
        $region62: #{bert_classifier_forward.13} parent=59 // pred_check_branch
          %616 = sbr.rel (%p614) target = $region64
        $region63: #{bert_classifier_forward.13} parent=59 // pred_region
          %s617 = sand.u32 %s160, 1
          %s618 = scalar_lea.sflag [#allocation4], %s617
          %s619 = sand.u32 %s160, 1
          %s620 = smul.addr %s619, 4
          %s621 = scalar_lea.vmem [#allocation10], %s620
          %622 = dma.done %s618, 64
        $region64: #{bert_classifier_forward.13} parent=59 // pred_fallthru
          _
      $region60: #{bert_classifier_forward.13} parent=5 // pred_fallthru
        _
    $region6: #{bert_classifier_forward.13} parent=1 // loop_footer
      %s26 = sadd.s32 1, %s22
    $region7: #{bert_classifier_forward.13} parent=1 // loop_footer_branch
      %21 = sbr.rel target = $region3
    $region8: #{bert_classifier_forward.13} parent=1 // loop_exit
      _
    %623 = vsyncpa [#allocation3], 1
    %s624 = scalar_lea.sflag [#allocation3], 1
    %625 = vsyncpa %s624, 1
    %626 = vsyncpa [#allocation6], 1
    %s627 = scalar_lea.sflag [#allocation6], 1
    %628 = vsyncpa %s627, 1
    %629 = vsyncpa [#allocation9], 1
    %s630 = scalar_lea.sflag [#allocation9], 1
    %631 = vsyncpa %s630, 1
    %632 = vsyncpa [#allocation4], 1
    %s633 = scalar_lea.sflag [#allocation4], 1
    %634 = vsyncpa %s633, 1

// kernel: bert_classifier_forward.15
$region0: #{bert_classifier_forward.15}
  #allocation0 [shape = 'u32[]', space=smem, size = 0x4, offset = 0x4, fixed_abs, tag = 'smem constant byte address 0x4 - core index']
  #allocation1 [shape = 'u32[144,128]{1,0:T(1,128)}', space=vmem, size = 0x12000, scoped, tag = 'internal scratch']
  %s0 = inlined_call_operand.hbm [shape: bf16[16,32], index: 0, kind: input, shape index: {}]
  %s1 = inlined_call_operand.hbm [shape: bf16[32,64], index: 1, kind: input, shape index: {}]
  %s2 = inlined_call_operand.hbm [shape: f32[1,64], index: 2, kind: input, shape index: {}]
  %s3 = inlined_call_operand.hbm [shape: bf16[16,64], index: 3, kind: output, shape index: {}]
  %s4 = sld [smem:[#allocation0]]
  $region34: #{bert_classifier_forward.15} parent=0
    _
  %s6 = ssub.s32 1, %s4
  %s7 = scalar_select 0, %s6, %s4
  $region1: #{bert_classifier_forward.15} parent=0
    #allocation2 [shape = 'u8[4096]{0}', space=vmem, size = 0x1000, scoped, tag = 'input window, operand 0, single buffered']
    #allocation3 [shape = 's32[1]{0}', space=sflag, size = 0x4, scoped, tag = 'scoped memory for bert_classifier_forward.15']
    #allocation4 [shape = 's32[1]{0}', space=sflag, size = 0x4, scoped, tag = 'scoped memory for bert_classifier_forward.15']
    #allocation5 [shape = 'u8[8192]{0}', space=vmem, size = 0x2000, scoped, tag = 'input window, operand 1, single buffered']
    #allocation6 [shape = 's32[1]{0}', space=sflag, size = 0x4, scoped, tag = 'scoped memory for bert_classifier_forward.15']
    #allocation7 [shape = 'u8[512]{0}', space=vmem, size = 0x400, scoped, tag = 'input window, operand 2, single buffered']
    #allocation8 [shape = 'u8[4096]{0}', space=vmem, size = 0x1000, scoped, tag = 'output window, operand 0, single buffered']
    %8 = vsyncpa [#allocation3], 0
    %9 = vsyncpa [#allocation6], 0
    %10 = vsyncpa [#allocation4], 0
    // Predicated region
    $region2: #{bert_classifier_forward.15} parent=1 // pred_check
      _
    $region3: #{bert_classifier_forward.15} parent=1 // pred_check_branch
      %12 = sbr.rel (0) target = $region5
    $region4: #{bert_classifier_forward.15} parent=1 // pred_region
      %s14 = ssub.s32 128, 128
      %15 = vsyncadd [#allocation3], %s14
      %s16 = sshll.u32 [#allocation2], 4
      %s17 = int_to_ptr.vmem [resolvable:$true] %s16
      %22 = dma.hbm_to_vmem [thread:$0]  %s0, 128, %s17, [#allocation3], 64, 64, 4
    $region5: #{bert_classifier_forward.15} parent=1 // pred_fallthru
      _
    // Predicated region
    $region6: #{bert_classifier_forward.15} parent=1 // pred_check
      _
    $region7: #{bert_classifier_forward.15} parent=1 // pred_check_branch
      %24 = sbr.rel (0) target = $region9
    $region8: #{bert_classifier_forward.15} parent=1 // pred_region
      %s26 = ssub.s32 256, 256
      %27 = vsyncadd [#allocation6], %s26
      %s28 = sshll.u32 [#allocation5], 4
      %s29 = int_to_ptr.vmem [resolvable:$true] %s28
      %34 = dma.hbm_to_vmem [thread:$0]  %s1, 256, %s29, [#allocation6], 64, 64, 4
    $region9: #{bert_classifier_forward.15} parent=1 // pred_fallthru
      _
    // Predicated region
    $region10: #{bert_classifier_forward.15} parent=1 // pred_check
      _
    $region11: #{bert_classifier_forward.15} parent=1 // pred_check_branch
      %36 = sbr.rel (0) target = $region13
    $region12: #{bert_classifier_forward.15} parent=1 // pred_region
      %s38 = ssub.s32 16, 16
      %39 = vsyncadd [#allocation6], %s38
      %s41 = sshll.u32 [#allocation7], 4
      %s42 = int_to_ptr.vmem [resolvable:$true] %s41
      %44 = dma.hbm_to_vmem [thread:$0]  %s2, 16, %s42, [#allocation6]
    $region13: #{bert_classifier_forward.15} parent=1 // pred_fallthru
      _
    // Predicated region
    $region14: #{bert_classifier_forward.15} parent=1 // pred_check
      _
    $region15: #{bert_classifier_forward.15} parent=1 // pred_check_branch
      %46 = sbr.rel (0) target = $region17
    $region16: #{bert_classifier_forward.15} parent=1 // pred_region
      %47 = dma.done [#allocation3], 128
    $region17: #{bert_classifier_forward.15} parent=1 // pred_fallthru
      _
    // Predicated region
    $region18: #{bert_classifier_forward.15} parent=1 // pred_check
      _
    $region19: #{bert_classifier_forward.15} parent=1 // pred_check_branch
      %49 = sbr.rel (0) target = $region21
    $region20: #{bert_classifier_forward.15} parent=1 // pred_region
      %50 = dma.done [#allocation6], 256
    $region21: #{bert_classifier_forward.15} parent=1 // pred_fallthru
      _
    // Predicated region
    $region22: #{bert_classifier_forward.15} parent=1 // pred_check
      _
    $region23: #{bert_classifier_forward.15} parent=1 // pred_check_branch
      %52 = sbr.rel (0) target = $region25
    $region24: #{bert_classifier_forward.15} parent=1 // pred_region
      %53 = dma.done [#allocation6], 16
    $region25: #{bert_classifier_forward.15} parent=1 // pred_fallthru
      _
    %v55 = vld [vmem:[#allocation2] sm:$0xf]
    %v56 = vld [vmem:[#allocation2 + $0x4] sm:$0xf]
    %v57 = vld [vmem:[#allocation5] sm:$0xf]
    %v58 = vld [vmem:[#allocation5 + $0x4] sm:$0xf]
    %v59 = vld [vmem:[#allocation5 + $0x8] sm:$0xf]
    %v60 = vld [vmem:[#allocation5 + $0xc] sm:$0xf]
    %v61 = vld [vmem:[#allocation7] sm:$0x1]
    %v63 = vlaneseq
    %v64 = vshrl.u32 %v63, 7
    %v65 = vsub.s32 0, %v64
    %v66 = vrot.slane %v61, %v65
    %v70 = vunpack.c.l.b16 %v55
    %v71 = vunpack.c.l.b16 %v56
    %v72 = vpack.c.b16 %v71, %v70
    %v77 = vunpack.c.l.b16 %v57
    %v78 = vunpack.c.l.b16 %v58
    %v79 = vunpack.c.l.b16 %v59
    %v80 = vunpack.c.l.b16 %v60
    %v81 = vpack.c.b16 %v78, %v77
    %v82 = vpack.c.b16 %v80, %v79
    %vm85 = vcmask 261120
    %v87 = vsel %vm85, %v72, 0
    %89 = vmatprep.subr.bf16.mxu0 0
    %90 = vmatpush1.bf16.msra.mxu0 %v81
    %91 = vmatprep.subr.bf16.mxu0 0
    %92 = vmatpush1.bf16.msra.mxu0 %v82
    %93 = vmatprep.subr.bf16.mxu0 0
    %94 = vmatpush1.bf16.msra.mxu0 0
    %95 = vmatprep.subr.bf16.mxu0 0
    %96 = vmatpush1.bf16.msra.mxu0 0
    %97 = vmatprep.subr.bf16.mxu0 0
    %98 = vmatpush1.bf16.msra.mxu0 0
    %99 = vmatprep.subr.bf16.mxu0 0
    %100 = vmatpush1.bf16.msra.mxu0 0
    %101 = vmatprep.subr.bf16.mxu0 0
    %102 = vmatpush1.bf16.msra.mxu0 0
    %103 = vmatprep.subr.bf16.mxu0 0
    %104 = vmatpush1.bf16.msra.mxu0 0
    %105 = vmatprep.subr.bf16.mxu0 0
    %106 = vmatpush1.bf16.msra.mxu0 0
    %107 = vmatprep.subr.bf16.mxu0 0
    %108 = vmatpush1.bf16.msra.mxu0 0
    %109 = vmatprep.subr.bf16.mxu0 0
    %110 = vmatpush1.bf16.msra.mxu0 0
    %111 = vmatprep.subr.bf16.mxu0 0
    %112 = vmatpush1.bf16.msra.mxu0 0
    %113 = vmatprep.subr.bf16.mxu0 0
    %114 = vmatpush1.bf16.msra.mxu0 0
    %115 = vmatprep.subr.bf16.mxu0 0
    %116 = vmatpush1.bf16.msra.mxu0 0
    %117 = vmatprep.subr.bf16.mxu0 0
    %118 = vmatpush1.bf16.msra.mxu0 0
    %119 = vmatprep.subr.bf16.mxu0 0
    %120 = vmatpush1.bf16.msra.mxu0 0
    %121 = vmatprep.mubr.bf16.mxu0 0
    %122 = vmatmul.mubr.bf16.gmra.mrb[0].mxu0 %v87
    %v123 = vpop.f32.mrb[0].mxu0
    %v124 = vadd.f32 %v66, %v123
    %v125 = vpop.f32.mrb[0].mxu0
    %v126 = vpop.f32.mrb[0].mxu0
    %v127 = vadd.f32 %v66, %v126
    %v128 = vpop.f32.mrb[0].mxu0
    %129 = vdwg.mxu0
    %v130 = vmul.f32 %v124, 0.5
    %v131 = vmul.f32 %v127, 0.5
    %v132 = vmul.f32 %v124, 0.044715
    %v133 = vmul.f32 %v127, 0.044715
    %v134 = vmul.f32 %v132, %v124
    %v135 = vmul.f32 %v133, %v127
    %v136 = vmul.f32 %v134, %v124
    %v137 = vmul.f32 %v135, %v127
    %v138 = vadd.f32 %v124, %v136
    %v139 = vadd.f32 %v127, %v137
    %v140 = vmul.f32 %v138, 0.7978846
    %v141 = vmul.f32 %v139, 0.7978846
    %v142 = vtanh.pop %v140
    %v143 = vtanh.pop %v141
    %v144 = vadd.f32 %v142, 1.0
    %v145 = vadd.f32 %v143, 1.0
    %v146 = vmul.f32 %v130, %v144
    %v147 = vmul.f32 %v131, %v145
    %v148 = vpack.c.bf16 %v147, %v146
    %v150 = vunpack.c.l.b16 %v148
    %v151 = vunpack.c.h.b16 %v148
    %v152 = vpack.c.b16 %v150, %v150
    %v153 = vpack.c.b16 %v151, %v151
    %vm156 = vcmask 519168
    %157 = vst.msk [vmem:[#allocation8] sm:$0xf] %vm156, %v152
    %158 = vst.msk [vmem:[#allocation8 + $0x4] sm:$0xf] %vm156, %v153
    // Predicated region
    $region26: #{bert_classifier_forward.15} parent=1 // pred_check
      _
    $region27: #{bert_classifier_forward.15} parent=1 // pred_check_branch
      %160 = sbr.rel (0) target = $region29
    $region28: #{bert_classifier_forward.15} parent=1 // pred_region
      %s162 = ssub.s32 128, 128
      %163 = vsyncadd [#allocation4], %s162
      %s164 = sshll.u32 [#allocation8], 4
      %s165 = int_to_ptr.vmem [resolvable:$true] %s164
      %170 = dma.vmem_to_hbm [thread:$0]  %s165, 128, %s3, [#allocation4], 64, 64, 4
    $region29: #{bert_classifier_forward.15} parent=1 // pred_fallthru
      _
    // Predicated region
    $region30: #{bert_classifier_forward.15} parent=1 // pred_check
      _
    $region31: #{bert_classifier_forward.15} parent=1 // pred_check_branch
      %172 = sbr.rel (0) target = $region33
    $region32: #{bert_classifier_forward.15} parent=1 // pred_region
      %173 = dma.done [#allocation4], 128
    $region33: #{bert_classifier_forward.15} parent=1 // pred_fallthru
      _
    %174 = vsyncpa [#allocation3], 1
    %175 = vsyncpa [#allocation6], 1
    %176 = vsyncpa [#allocation4], 1

// kernel: bert_classifier_forward.16
$region0: #{bert_classifier_forward.16}
  #allocation0 [shape = 'u32[]', space=smem, size = 0x4, offset = 0x4, fixed_abs, tag = 'smem constant byte address 0x4 - core index']
  #allocation1 [shape = 'u32[144,128]{1,0:T(1,128)}', space=vmem, size = 0x12000, scoped, tag = 'internal scratch']
  %s0 = inlined_call_operand.hbm [shape: bf16[16,64], index: 0, kind: input, shape index: {}]
  %s1 = inlined_call_operand.hbm [shape: bf16[64,32], index: 1, kind: input, shape index: {}]
  %s2 = inlined_call_operand.hbm [shape: f32[1,32], index: 2, kind: input, shape index: {}]
  %s3 = inlined_call_operand.hbm [shape: bf16[16,32], index: 3, kind: input, shape index: {}]
  %s4 = inlined_call_operand.hbm [shape: f32[1,32], index: 4, kind: input, shape index: {}]
  %s5 = inlined_call_operand.hbm [shape: f32[1,32], index: 5, kind: input, shape index: {}]
  %s6 = inlined_call_operand.hbm [shape: bf16[16,32], index: 6, kind: output, shape index: {}]
  %s7 = sld [smem:[#allocation0]]
  $region58: #{bert_classifier_forward.16} parent=0
    _
  %s9 = ssub.s32 1, %s7
  %s10 = scalar_select 0, %s9, %s7
  $region1: #{bert_classifier_forward.16} parent=0
    #allocation2 [shape = 'u8[4096]{0}', space=vmem, size = 0x1000, scoped, tag = 'input window, operand 0, single buffered']
    #allocation3 [shape = 's32[1]{0}', space=sflag, size = 0x4, scoped, tag = 'scoped memory for bert_classifier_forward.16']
    #allocation4 [shape = 's32[1]{0}', space=sflag, size = 0x4, scoped, tag = 'scoped memory for bert_classifier_forward.16']
    #allocation5 [shape = 'u8[16384]{0}', space=vmem, size = 0x4000, scoped, tag = 'input window, operand 1, single buffered']
    #allocation6 [shape = 's32[1]{0}', space=sflag, size = 0x4, scoped, tag = 'scoped memory for bert_classifier_forward.16']
    #allocation7 [shape = 'u8[512]{0}', space=vmem, size = 0x400, scoped, tag = 'input window, operand 2, single buffered']
    #allocation8 [shape = 'u8[4096]{0}', space=vmem, size = 0x1000, scoped, tag = 'input window, operand 3, single buffered']
    #allocation9 [shape = 's32[1]{0}', space=sflag, size = 0x4, scoped, tag = 'scoped memory for bert_classifier_forward.16']
    #allocation10 [shape = 'u8[512]{0}', space=vmem, size = 0x400, scoped, tag = 'input window, operand 4, single buffered']
    #allocation11 [shape = 'u8[512]{0}', space=vmem, size = 0x400, scoped, tag = 'input window, operand 5, single buffered']
    #allocation12 [shape = 's32[1]{0}', space=sflag, size = 0x4, scoped, tag = 'scoped memory for bert_classifier_forward.16']
    #allocation13 [shape = 'u8[4096]{0}', space=vmem, size = 0x1000, scoped, tag = 'output window, operand 0, single buffered']
    %11 = vsyncpa [#allocation3], 0
    %12 = vsyncpa [#allocation6], 0
    %13 = vsyncpa [#allocation9], 0
    %14 = vsyncpa [#allocation12], 0
    %15 = vsyncpa [#allocation4], 0
    // Predicated region
    $region2: #{bert_classifier_forward.16} parent=1 // pred_check
      _
    $region3: #{bert_classifier_forward.16} parent=1 // pred_check_branch
      %17 = sbr.rel (0) target = $region5
    $region4: #{bert_classifier_forward.16} parent=1 // pred_region
      %s19 = ssub.s32 128, 128
      %20 = vsyncadd [#allocation3], %s19
      %s21 = sshll.u32 [#allocation2], 4
      %s22 = int_to_ptr.vmem [resolvable:$true] %s21
      %27 = dma.hbm_to_vmem [thread:$0]  %s0, 128, %s22, [#allocation3], 64, 64, 4
    $region5: #{bert_classifier_forward.16} parent=1 // pred_fallthru
      _
    // Predicated region
    $region6: #{bert_classifier_forward.16} parent=1 // pred_check
      _
    $region7: #{bert_classifier_forward.16} parent=1 // pred_check_branch
      %29 = sbr.rel (0) target = $region9
    $region8: #{bert_classifier_forward.16} parent=1 // pred_region
      %s31 = ssub.s32 512, 512
      %32 = vsyncadd [#allocation6], %s31
      %s33 = sshll.u32 [#allocation5], 4
      %s34 = int_to_ptr.vmem [resolvable:$true] %s33
      %39 = dma.hbm_to_vmem [thread:$0]  %s1, 512, %s34, [#allocation6], 64, 64, 4
    $region9: #{bert_classifier_forward.16} parent=1 // pred_fallthru
      _
    // Predicated region
    $region10: #{bert_classifier_forward.16} parent=1 // pred_check
      _
    $region11: #{bert_classifier_forward.16} parent=1 // pred_check_branch
      %41 = sbr.rel (0) target = $region13
    $region12: #{bert_classifier_forward.16} parent=1 // pred_region
      %s43 = ssub.s32 16, 16
      %44 = vsyncadd [#allocation6], %s43
      %s46 = sshll.u32 [#allocation7], 4
      %s47 = int_to_ptr.vmem [resolvable:$true] %s46
      %49 = dma.hbm_to_vmem [thread:$0]  %s2, 16, %s47, [#allocation6]
    $region13: #{bert_classifier_forward.16} parent=1 // pred_fallthru
      _
    // Predicated region
    $region14: #{bert_classifier_forward.16} parent=1 // pred_check
      _
    $region15: #{bert_classifier_forward.16} parent=1 // pred_check_branch
      %51 = sbr.rel (0) target = $region17
    $region16: #{bert_classifier_forward.16} parent=1 // pred_region
      %s53 = ssub.s32 128, 128
      %54 = vsyncadd [#allocation9], %s53
      %s55 = sshll.u32 [#allocation8], 4
      %s56 = int_to_ptr.vmem [resolvable:$true] %s55
      %61 = dma.hbm_to_vmem [thread:$0]  %s3, 128, %s56, [#allocation9], 64, 64, 4
    $region17: #{bert_classifier_forward.16} parent=1 // pred_fallthru
      _
    // Predicated region
    $region18: #{bert_classifier_forward.16} parent=1 // pred_check
      _
    $region19: #{bert_classifier_forward.16} parent=1 // pred_check_branch
      %63 = sbr.rel (0) target = $region21
    $region20: #{bert_classifier_forward.16} parent=1 // pred_region
      %s65 = ssub.s32 16, 16
      %66 = vsyncadd [#allocation9], %s65
      %s68 = sshll.u32 [#allocation10], 4
      %s69 = int_to_ptr.vmem [resolvable:$true] %s68
      %71 = dma.hbm_to_vmem [thread:$0]  %s4, 16, %s69, [#allocation9]
    $region21: #{bert_classifier_forward.16} parent=1 // pred_fallthru
      _
    // Predicated region
    $region22: #{bert_classifier_forward.16} parent=1 // pred_check
      _
    $region23: #{bert_classifier_forward.16} parent=1 // pred_check_branch
      %73 = sbr.rel (0) target = $region25
    $region24: #{bert_classifier_forward.16} parent=1 // pred_region
      %s75 = ssub.s32 16, 16
      %76 = vsyncadd [#allocation12], %s75
      %s78 = sshll.u32 [#allocation11], 4
      %s79 = int_to_ptr.vmem [resolvable:$true] %s78
      %81 = dma.hbm_to_vmem [thread:$0]  %s5, 16, %s79, [#allocation12]
    $region25: #{bert_classifier_forward.16} parent=1 // pred_fallthru
      _
    // Predicated region
    $region26: #{bert_classifier_forward.16} parent=1 // pred_check
      _
    $region27: #{bert_classifier_forward.16} parent=1 // pred_check_branch
      %83 = sbr.rel (0) target = $region29
    $region28: #{bert_classifier_forward.16} parent=1 // pred_region
      %84 = dma.done [#allocation3], 128
    $region29: #{bert_classifier_forward.16} parent=1 // pred_fallthru
      _
    // Predicated region
    $region30: #{bert_classifier_forward.16} parent=1 // pred_check
      _
    $region31: #{bert_classifier_forward.16} parent=1 // pred_check_branch
      %86 = sbr.rel (0) target = $region33
    $region32: #{bert_classifier_forward.16} parent=1 // pred_region
      %87 = dma.done [#allocation6], 512
    $region33: #{bert_classifier_forward.16} parent=1 // pred_fallthru
      _
    // Predicated region
    $region34: #{bert_classifier_forward.16} parent=1 // pred_check
      _
    $region35: #{bert_classifier_forward.16} parent=1 // pred_check_branch
      %89 = sbr.rel (0) target = $region37
    $region36: #{bert_classifier_forward.16} parent=1 // pred_region
      %90 = dma.done [#allocation6], 16
    $region37: #{bert_classifier_forward.16} parent=1 // pred_fallthru
      _
    // Predicated region
    $region38: #{bert_classifier_forward.16} parent=1 // pred_check
      _
    $region39: #{bert_classifier_forward.16} parent=1 // pred_check_branch
      %92 = sbr.rel (0) target = $region41
    $region40: #{bert_classifier_forward.16} parent=1 // pred_region
      %93 = dma.done [#allocation9], 128
    $region41: #{bert_classifier_forward.16} parent=1 // pred_fallthru
      _
    // Predicated region
    $region42: #{bert_classifier_forward.16} parent=1 // pred_check
      _
    $region43: #{bert_classifier_forward.16} parent=1 // pred_check_branch
      %95 = sbr.rel (0) target = $region45
    $region44: #{bert_classifier_forward.16} parent=1 // pred_region
      %96 = dma.done [#allocation9], 16
    $region45: #{bert_classifier_forward.16} parent=1 // pred_fallthru
      _
    // Predicated region
    $region46: #{bert_classifier_forward.16} parent=1 // pred_check
      _
    $region47: #{bert_classifier_forward.16} parent=1 // pred_check_branch
      %98 = sbr.rel (0) target = $region49
    $region48: #{bert_classifier_forward.16} parent=1 // pred_region
      %99 = dma.done [#allocation12], 16
    $region49: #{bert_classifier_forward.16} parent=1 // pred_fallthru
      _
    %v101 = vld [vmem:[#allocation2] sm:$0xf]
    %v102 = vld [vmem:[#allocation2 + $0x4] sm:$0xf]
    %v103 = vld [vmem:[#allocation5] sm:$0xf]
    %v104 = vld [vmem:[#allocation5 + $0x4] sm:$0xf]
    %v105 = vld [vmem:[#allocation5 + $0x8] sm:$0xf]
    %v106 = vld [vmem:[#allocation5 + $0xc] sm:$0xf]
    %v107 = vld [vmem:[#allocation5 + $0x10] sm:$0xf]
    %v108 = vld [vmem:[#allocation5 + $0x14] sm:$0xf]
    %v109 = vld [vmem:[#allocation5 + $0x18] sm:$0xf]
    %v110 = vld [vmem:[#allocation5 + $0x1c] sm:$0xf]
    %v111 = vld [vmem:[#allocation7] sm:$0x1]
    %v113 = vlaneseq
    %v114 = vshrl.u32 %v113, 7
    %v115 = vsub.s32 0, %v114
    %v116 = vrot.slane %v111, %v115
    %v120 = vunpack.c.l.b16 %v101
    %v121 = vunpack.c.l.b16 %v102
    %v122 = vpack.c.b16 %v121, %v120
    %v131 = vunpack.c.l.b16 %v103
    %v132 = vunpack.c.l.b16 %v104
    %v133 = vunpack.c.l.b16 %v105
    %v134 = vunpack.c.l.b16 %v106
    %v135 = vunpack.c.l.b16 %v107
    %v136 = vunpack.c.l.b16 %v108
    %v137 = vunpack.c.l.b16 %v109
    %v138 = vunpack.c.l.b16 %v110
    %v139 = vpack.c.b16 %v132, %v131
    %v140 = vpack.c.b16 %v134, %v133
    %v141 = vpack.c.b16 %v136, %v135
    %v142 = vpack.c.b16 %v138, %v137
    %vm147 = vcmask 523264
    %v149 = vsel %vm147, %v122, 0
    %151 = vmatprep.subr.bf16.mxu0 0
    %152 = vmatpush1.bf16.msra.mxu0 %v139
    %153 = vmatprep.subr.bf16.mxu0 0
    %154 = vmatpush1.bf16.msra.mxu0 %v140
    %155 = vmatprep.subr.bf16.mxu0 0
    %156 = vmatpush1.bf16.msra.mxu0 %v141
    %157 = vmatprep.subr.bf16.mxu0 0
    %158 = vmatpush1.bf16.msra.mxu0 %v142
    %159 = vmatprep.subr.bf16.mxu0 0
    %160 = vmatpush1.bf16.msra.mxu0 0
    %161 = vmatprep.subr.bf16.mxu0 0
    %162 = vmatpush1.bf16.msra.mxu0 0
    %163 = vmatprep.subr.bf16.mxu0 0
    %164 = vmatpush1.bf16.msra.mxu0 0
    %165 = vmatprep.subr.bf16.mxu0 0
    %166 = vmatpush1.bf16.msra.mxu0 0
    %167 = vmatprep.subr.bf16.mxu0 0
    %168 = vmatpush1.bf16.msra.mxu0 0
    %169 = vmatprep.subr.bf16.mxu0 0
    %170 = vmatpush1.bf16.msra.mxu0 0
    %171 = vmatprep.subr.bf16.mxu0 0
    %172 = vmatpush1.bf16.msra.mxu0 0
    %173 = vmatprep.subr.bf16.mxu0 0
    %174 = vmatpush1.bf16.msra.mxu0 0
    %175 = vmatprep.subr.bf16.mxu0 0
    %176 = vmatpush1.bf16.msra.mxu0 0
    %177 = vmatprep.subr.bf16.mxu0 0
    %178 = vmatpush1.bf16.msra.mxu0 0
    %179 = vmatprep.subr.bf16.mxu0 0
    %180 = vmatpush1.bf16.msra.mxu0 0
    %181 = vmatprep.subr.bf16.mxu0 0
    %182 = vmatpush1.bf16.msra.mxu0 0
    %183 = vmatprep.mubr.bf16.mxu0 0
    %184 = vmatmul.mubr.bf16.gmra.mrb[0].mxu0 %v149
    %v185 = vpop.f32.mrb[0].mxu0
    %v186 = vadd.f32 %v116, %v185
    %v187 = vpop.f32.mrb[0].mxu0
    %v188 = vpop.f32.mrb[0].mxu0
    %v189 = vadd.f32 %v116, %v188
    %v190 = vpop.f32.mrb[0].mxu0
    %191 = vdwg.mxu0
    %v192 = vld [vmem:[#allocation8] sm:$0xf]
    %v193 = vld [vmem:[#allocation8 + $0x4] sm:$0xf]
    %v194 = vunpack.c.l.bf16 %v192
    %v195 = vunpack.c.l.bf16 %v193
    %v196 = vadd.f32 %v186, %v194
    %v197 = vadd.f32 %v189, %v195
    %vm198 = vcmask 261120
    %v199 = vsel %vm198, %v196, 0.0
    %200 = vadd.xlane.f32.xlu0 %v199
    %v201 = vpop.xlane.xlu0 %200
    %v202 = vsel %vm198, %v197, 0.0
    %203 = vadd.xlane.f32.xlu0 %v202
    %v204 = vpop.xlane.xlu0 %203
    %v205 = vrcp.pop 32.0
    %v206 = vmul.f32 %v201, %v205
    %v207 = vmul.f32 %v204, %v205
    %v208 = vsub.f32 %v196, %v206
    %v209 = vsub.f32 %v197, %v207
    %v210 = vmul.f32 %v208, %v208
    %v211 = vmul.f32 %v209, %v209
    %v212 = vsel %vm198, %v210, 0.0
    %213 = vadd.xlane.f32.xlu0 %v212
    %v214 = vpop.xlane.xlu0 %213
    %v215 = vsel %vm198, %v211, 0.0
    %216 = vadd.xlane.f32.xlu0 %v215
    %v217 = vpop.xlane.xlu0 %216
    %v218 = vmul.f32 %v214, %v205
    %v219 = vmul.f32 %v217, %v205
    %v220 = vadd.f32 %v218, 1e-12
    %v221 = vadd.f32 %v219, 1e-12
    %v222 = vrsqrt.pop %v220
    %v223 = vrsqrt.pop %v221
    %v224 = vmul.f32 %v208, %v222
    %v225 = vmul.f32 %v209, %v223
    %v226 = vld [vmem:[#allocation10] sm:$0x1]
    %v228 = vlaneseq
    %v229 = vshrl.u32 %v228, 7
    %v230 = vsub.s32 0, %v229
    %v231 = vrot.slane %v226, %v230
    %v233 = vmul.f32 %v224, %v231
    %v234 = vmul.f32 %v225, %v231
    %v235 = vld [vmem:[#allocation11] sm:$0x1]
    %v237 = vlaneseq
    %v238 = vshrl.u32 %v237, 7
    %v239 = vsub.s32 0, %v238
    %v240 = vrot.slane %v235, %v239
    %v242 = vadd.f32 %v233, %v240
    %v243 = vadd.f32 %v234, %v240
    %v244 = vpack.c.bf16 %v243, %v242
    %v246 = vunpack.c.l.b16 %v244
    %v247 = vunpack.c.h.b16 %v244
    %v248 = vpack.c.b16 %v246, %v246
    %v249 = vpack.c.b16 %v247, %v247
    %vm252 = vcmask 257024
    %253 = vst.msk [vmem:[#allocation13] sm:$0xf] %vm252, %v248
    %254 = vst.msk [vmem:[#allocation13 + $0x4] sm:$0xf] %vm252, %v249
    // Predicated region
    $region50: #{bert_classifier_forward.16} parent=1 // pred_check
      _
    $region51: #{bert_classifier_forward.16} parent=1 // pred_check_branch
      %256 = sbr.rel (0) target = $region53
    $region52: #{bert_classifier_forward.16} parent=1 // pred_region
      %s258 = ssub.s32 128, 128
      %259 = vsyncadd [#allocation4], %s258
      %s260 = sshll.u32 [#allocation13], 4
      %s261 = int_to_ptr.vmem [resolvable:$true] %s260
      %266 = dma.vmem_to_hbm [thread:$0]  %s261, 128, %s6, [#allocation4], 64, 64, 4
    $region53: #{bert_classifier_forward.16} parent=1 // pred_fallthru
      _
    // Predicated region
    $region54: #{bert_classifier_forward.16} parent=1 // pred_check
      _
    $region55: #{bert_classifier_forward.16} parent=1 // pred_check_branch
      %268 = sbr.rel (0) target = $region57
    $region56: #{bert_classifier_forward.16} parent=1 // pred_region
      %269 = dma.done [#allocation4], 128
    $region57: #{bert_classifier_forward.16} parent=1 // pred_fallthru
      _
    %270 = vsyncpa [#allocation3], 1
    %271 = vsyncpa [#allocation6], 1
    %272 = vsyncpa [#allocation9], 1
    %273 = vsyncpa [#allocation12], 1
    %274 = vsyncpa [#allocation4], 1

</llo_original>
